<compile_context>
chip_gen: v6e
topology: v6e:2x2x1
jax: 0.10.0
libtpu: 0.0.40
codegen_flags: <defaults>
</compile_context>

<pallas_src>
import functools

import jax
import jax.numpy as jnp
from jax.experimental import pallas as pl
from jax.experimental.pallas import tpu as pltpu

NEG_SLOPE = 0.1   # leaky_relu negative_slope used throughout the model
BN_EPS = 1e-5     # nn.BatchNorm1d default eps
LANE = 128


def _leaky_relu(v):
    # Exact for 0 < slope < 1 and cheaper than where(cmp, v, slope*v).
    return jnp.maximum(v, NEG_SLOPE * v)


def _bf16(v):
    return v.astype(jnp.bfloat16)


def correlationnet_kernel(num_layers, x_ref, at_ref, gT_ref,
                          wlin_ref, b_ref, wgcnT_ref, wcorr_ref, tailw_ref,
                          out_ref):
    """Whole CorrelationNet forward in one kernel (everything resident in VMEM).

    Shapes (F = padded feature width, Np = padded node width, both lane-dense):
      x_ref     (B, F)    f32   DNN stream (zero-padded beyond real feature dim)
      at_ref    (Np, Np)  bf16  A^T (adjacency transposed, zero-padded)
      gT_ref    (F, Np)   f32   GCN stream, transposed & zero-padded
      wlin_ref  (L, F, F) bf16  BN-folded Linear weights, (in, out) layout
      b_ref     (L, 1, F) f32   BN-folded Linear biases
      wgcnT_ref (L, F, F) bf16  GCN weights, transposed: (out, in) layout
      wcorr_ref (L, Np, F) bf16 Correlation weights
      tailw_ref (F, Np)   f32   tail weight
      out_ref   (B, Np)   f32
    """
    x = x_ref[...]            # (B, F)  f32 carry
    AT = at_ref[...]          # (Np, Np) bf16
    xgT = gT_ref[...]         # (F, Np) f32 carry

    # TODO(synk): at L >> 2 replace the unrolled Python loop with
    # lax.fori_loop or a per-layer 'arbitrary' grid; at L = 2 unrolled is best.
    for i in range(num_layers):
        # ---- FCL: Linear (BatchNorm folded) -> Dropout(identity) -> ReLU
        h = jnp.dot(_bf16(x), wlin_ref[i],
                    preferred_element_type=jnp.float32) + b_ref[i]
        x = jnp.maximum(h, 0.0)

        # ---- GCN_layer (nonlinear=False), transposed stream:
        #      xg = A @ (xg @ Wgcn)  <=>  xgT = (WgcnT @ xgT) @ A^T
        t = jnp.dot(wgcnT_ref[i], _bf16(xgT),
                    preferred_element_type=jnp.float32)           # (F, Np)
        xgT = jnp.dot(_bf16(t), AT, preferred_element_type=jnp.float32)

        # ---- Correlation_layer: x1 = x @ leaky_relu(xg)^T ; x = x1 @ W + x
        lgT = _leaky_relu(xgT)                                     # (F, Np)
        x1 = jnp.dot(_bf16(x), _bf16(lgT),
                     preferred_element_type=jnp.float32)           # (B, Np)
        x = jnp.dot(_bf16(x1), wcorr_ref[i],
                    preferred_element_type=jnp.float32) + x        # (B, F)

        if i < num_layers - 1:
            xgT = lgT        # reuse: leaky_relu(xgT) was just computed above

    # ---- tail (fused): out = x @ xg^T + x @ tail_w == x @ (xg^T + tail_w)
    out_ref[...] = jnp.dot(_bf16(x), _bf16(xgT + tailw_ref[...]),
                           preferred_element_type=jnp.float32)


def _round_up(n, m):
    return ((n + m - 1) // m) * m


def _pad2(a, rows, cols, dtype=None):
    dtype = a.dtype if dtype is None else dtype
    r, c = a.shape
    out = jnp.zeros((rows, cols), dtype)
    return out.at[:r, :c].set(a.astype(dtype))


def pack_correlationnet_params(A, gcn_input, layer_params, tail_w, dnn_in_dim):
    """One-time prep (call at model init, NOT per forward).

    layer_params: list (len = L) of 8-tuples
      (wlin_T(in,out), b(1,out), gamma, beta, run_mean, run_var,
       wgcn(gin,out), wcorr(N,out))  — raw (unfolded, unpadded) parameters.
    Returns a dict of packed/padded arrays + metadata.
    """
    N = A.shape[0]
    Np = _round_up(max(N, 1), LANE)

    dims = [dnn_in_dim, gcn_input.shape[1]]
    for (wlin, *_rest) in layer_params:
        dims.extend(wlin.shape)
    F = _round_up(max(dims), LANE)

    wlin_s, b_s, wgcnT_s, wcorr_s = [], [], [], []
    for (wlin, b, gamma, beta, mean, var, wgcn, wcorr) in layer_params:
        scale = gamma / jnp.sqrt(var + BN_EPS)              # (1, dout)
        w_f = wlin * scale                                  # BN folded weight
        b_f = (b - mean) * scale + beta                     # BN folded bias
        wlin_s.append(_pad2(w_f, F, F, jnp.bfloat16))
        b_s.append(_pad2(b_f, 1, F, jnp.float32))
        wgcnT_s.append(_pad2(wgcn.T, F, F, jnp.bfloat16))   # (dout, gin) padded
        wcorr_s.append(_pad2(wcorr, Np, F, jnp.bfloat16))

    packed = dict(
        wlin=jnp.stack(wlin_s),                             # (L, F, F)  bf16
        b=jnp.stack(b_s),                                   # (L, 1, F)  f32
        wgcnT=jnp.stack(wgcnT_s),                           # (L, F, F)  bf16
        wcorr=jnp.stack(wcorr_s),                           # (L, Np, F) bf16
        AT=_pad2(A.T, Np, Np, jnp.bfloat16),                # (Np, Np)   bf16
        gT=_pad2(gcn_input.T, F, Np, jnp.float32),          # (F, Np)    f32
        tailw=_pad2(tail_w, F, Np, jnp.float32),            # (F, Np)    f32
        F=F, Np=Np, N=N, L=len(layer_params),
    )
    return packed


def correlationnet_forward_packed(x, packed):
    """Per-call path: pad x, run the kernel, slice the lane-dense output."""
    B = x.shape[0]
    F, Np, N, L = packed["F"], packed["Np"], packed["N"], packed["L"]

    x_pad = _pad2(x, B, F, jnp.float32)
    inputs = [x_pad, packed["AT"], packed["gT"], packed["wlin"], packed["b"],
              packed["wgcnT"], packed["wcorr"], packed["tailw"]]

    # ---- advisory cost estimate (tiny kernel; helps XLA scheduling)
    flops = 0
    for _ in range(L):
        flops += 2 * (B * F * F        # x @ wlin
                      + F * F * Np     # WgcnT @ xgT
                      + F * Np * Np    # ... @ A^T
                      + B * F * Np     # x @ lgT
                      + B * Np * F)    # x1 @ wcorr
    flops += 2 * B * F * Np            # fused tail
    out_bytes = B * Np * 4
    in_bytes = sum(int(a.size) * a.dtype.itemsize for a in inputs)
    cost = pl.CostEstimate(flops=int(flops), transcendentals=0,
                           bytes_accessed=int(in_bytes + out_bytes))

    # Tight VMEM limit: everything resident once + headroom for temporaries.
    vmem_bytes = int(2 * (in_bytes + out_bytes) + (2 << 20))

    vmem = pl.BlockSpec(memory_space=pltpu.MemorySpace.VMEM)

    out = pl.pallas_call(
        functools.partial(correlationnet_kernel, L),
        out_shape=jax.ShapeDtypeStruct((B, Np), jnp.float32),
        in_specs=[vmem] * len(inputs),
        out_specs=vmem,
        compiler_params=pltpu.CompilerParams(vmem_limit_bytes=vmem_bytes),
        cost_estimate=cost,
    )(*inputs)
    return out[:, :N]


def correlationnet_forward(x, A, gcn_input, layer_params, tail_w):
    """Convenience wrapper (packs every call — prefer packing once at init)."""
    packed = pack_correlationnet_params(A, gcn_input, layer_params, tail_w,
                                        dnn_in_dim=x.shape[1])
    return correlationnet_forward_packed(x, packed)


def reference_forward(x, A, gcn_input, layer_params, tail_w):
    """Pure-JAX f32 reference replicating the PyTorch forward (eval BN/Dropout)."""
    xg = gcn_input
    L = len(layer_params)
    for i, (wlin, b, gamma, beta, mean, var, wgcn, wcorr) in enumerate(layer_params):
        h = x @ wlin + b
        h = (h - mean) / jnp.sqrt(var + BN_EPS) * gamma + beta
        x = jnp.maximum(h, 0.0)
        xg = A @ (xg @ wgcn)
        lg = jnp.where(xg >= 0, xg, NEG_SLOPE * xg)
        x = (x @ lg.T) @ wcorr + x
        if i < L - 1:
            xg = jnp.where(xg >= 0, xg, NEG_SLOPE * xg)
    return x @ xg.T + x @ tail_w


if __name__ == "__main__":
    # Small deterministic config consistent with the module's __init__.
    B = 16                      # batch
    in_features_dnn = 32
    in_features_gcn = 16
    out_features = [32, 32]     # num_layers = 2
    num_layers = len(out_features)
    num_node = 8                # num_task (N)

    key = jax.random.PRNGKey(0)

    def nxt():
        global key
        key, sub = jax.random.split(key)
        return sub

    # Input to the DNN stream.
    x = jax.random.normal(nxt(), (B, in_features_dnn), dtype=jnp.float32)

    # Adjacency matrix, normalized like init_adjacency_matrix (synthetic A).
    A_raw = jax.random.uniform(nxt(), (num_node, num_node), dtype=jnp.float32)
    AA = jnp.eye(num_node, dtype=jnp.float32) + A_raw
    D = jnp.diag(1.0 / jnp.sqrt(AA.sum(axis=1)))
    A = D @ AA @ D

    # GCN input features (synthetic stand-in for input_feature.csv).
    gcn_input = 0.1 * (jax.random.uniform(nxt(), (num_node, in_features_gcn),
                                          dtype=jnp.float32) - 0.5)

    dims_dnn = [in_features_dnn] + out_features
    dims_gcn = [in_features_gcn] + out_features

    layer_params = []
    for i in range(num_layers):
        din, dout = dims_dnn[i], dims_dnn[i + 1]
        gin = dims_gcn[i]
        wlin_t = 0.1 * (jax.random.uniform(nxt(), (din, dout), dtype=jnp.float32) - 0.5)
        b = 0.1 * (jax.random.uniform(nxt(), (1, dout), dtype=jnp.float32) - 0.5)
        gamma = 1.0 + 0.1 * jax.random.uniform(nxt(), (1, dout), dtype=jnp.float32)
        beta = 0.1 * (jax.random.uniform(nxt(), (1, dout), dtype=jnp.float32) - 0.5)
        run_mean = 0.1 * (jax.random.uniform(nxt(), (1, dout), dtype=jnp.float32) - 0.5)
        run_var = 1.0 + 0.1 * jax.random.uniform(nxt(), (1, dout), dtype=jnp.float32)
        wgcn = 0.1 * (jax.random.uniform(nxt(), (gin, dout), dtype=jnp.float32) - 0.5)
        wcorr = 0.1 * (jax.random.uniform(nxt(), (num_node, dout), dtype=jnp.float32) - 0.5)
        layer_params.append((wlin_t, b, gamma, beta, run_mean, run_var, wgcn, wcorr))

    tail_w = 0.1 * jax.random.uniform(nxt(), (out_features[-1], num_node),
                                      dtype=jnp.float32)

    # One-time packing (BN fold + pad + stack), then the cheap per-call path.
    packed = pack_correlationnet_params(A, gcn_input, layer_params, tail_w,
                                        dnn_in_dim=in_features_dnn)
    packed = jax.tree_util.tree_map(
        lambda v: jax.block_until_ready(v) if isinstance(v, jax.Array) else v,
        packed)

    out = correlationnet_forward_packed(x, packed)
    out = jax.block_until_ready(out)

    ref = reference_forward(x, A, gcn_input, layer_params, tail_w)
    assert out.shape == (B, num_node)
    # bf16 weights on the MXU (f32 accumulation) -> relaxed tolerance.
    assert jnp.allclose(out, ref, rtol=2e-2, atol=2e-2), "mismatch vs reference"

    print("KERNEL_OK")
</pallas_src>

<mosaic_0001>
module attributes {stable_mosaic.version = 11 : i64} {
  func.func @correlationnet_kernel(%arg0: memref<16x128xf32, #tpu.memory_space<vmem>>, %arg1: memref<128x128xbf16, #tpu.memory_space<vmem>>, %arg2: memref<128x128xf32, #tpu.memory_space<vmem>>, %arg3: memref<2x128x128xbf16, #tpu.memory_space<vmem>>, %arg4: memref<2x1x128xf32, #tpu.memory_space<vmem>>, %arg5: memref<2x128x128xbf16, #tpu.memory_space<vmem>>, %arg6: memref<2x128x128xbf16, #tpu.memory_space<vmem>>, %arg7: memref<128x128xf32, #tpu.memory_space<vmem>>, %arg8: memref<16x128xf32, #tpu.memory_space<vmem>>) attributes {dimension_semantics = [], scalar_prefetch = 0 : i64, scratch_operands = 0 : i64, tpu.core_type = #tpu.core_type<tc>} {
    %c0 = arith.constant 0 : index
    %c0_0 = arith.constant 0 : index
    %0 = vector.load %arg0[%c0, %c0_0] : memref<16x128xf32, #tpu.memory_space<vmem>>, vector<16x128xf32>
    %c0_1 = arith.constant 0 : index
    %c0_2 = arith.constant 0 : index
    %1 = vector.load %arg1[%c0_1, %c0_2] : memref<128x128xbf16, #tpu.memory_space<vmem>>, vector<128x128xbf16>
    %c0_3 = arith.constant 0 : index
    %c0_4 = arith.constant 0 : index
    %2 = vector.load %arg2[%c0_3, %c0_4] : memref<128x128xf32, #tpu.memory_space<vmem>>, vector<128x128xf32>
    %3 = arith.truncf %0 : vector<16x128xf32> to vector<16x128xbf16>
    %c0_5 = arith.constant 0 : index
    %c0_6 = arith.constant 0 : index
    %c0_7 = arith.constant 0 : index
    %4 = vector.load %arg3[%c0_5, %c0_6, %c0_7] : memref<2x128x128xbf16, #tpu.memory_space<vmem>>, vector<1x128x128xbf16>
    %5 = vector.shape_cast %4 : vector<1x128x128xbf16> to vector<128x128xbf16>
    %cst = arith.constant dense<0.000000e+00> : vector<16x128xf32>
    %6 = tpu.matmul %3, %5, %cst {dimension_numbers = #tpu.dot_dimension_numbers<[1], [0], [0], [1], [0, 0, 1, 1], [], []>} : vector<16x128xbf16>, vector<128x128xbf16>, vector<16x128xf32> -> vector<16x128xf32>
    %c0_8 = arith.constant 0 : index
    %c0_9 = arith.constant 0 : index
    %c0_10 = arith.constant 0 : index
    %7 = vector.load %arg4[%c0_8, %c0_9, %c0_10] : memref<2x1x128xf32, #tpu.memory_space<vmem>>, vector<1x1x128xf32>
    %8 = vector.shape_cast %7 : vector<1x1x128xf32> to vector<1x128xf32>
    %9 = vector.broadcast %8 : vector<1x128xf32> to vector<16x128xf32>
    %10 = arith.addf %6, %9 : vector<16x128xf32>
    %cst_11 = arith.constant 0.000000e+00 : f32
    %11 = vector.broadcast %cst_11 : f32 to vector<16x128xf32>
    %12 = arith.maximumf %10, %11 : vector<16x128xf32>
    %c0_12 = arith.constant 0 : index
    %c0_13 = arith.constant 0 : index
    %c0_14 = arith.constant 0 : index
    %13 = vector.load %arg5[%c0_12, %c0_13, %c0_14] : memref<2x128x128xbf16, #tpu.memory_space<vmem>>, vector<1x128x128xbf16>
    %14 = vector.shape_cast %13 : vector<1x128x128xbf16> to vector<128x128xbf16>
    %15 = arith.truncf %2 : vector<128x128xf32> to vector<128x128xbf16>
    %cst_15 = arith.constant dense<0.000000e+00> : vector<128x128xf32>
    %16 = tpu.matmul %14, %15, %cst_15 {dimension_numbers = #tpu.dot_dimension_numbers<[1], [0], [0], [1], [0, 0, 1, 1], [], []>} : vector<128x128xbf16>, vector<128x128xbf16>, vector<128x128xf32> -> vector<128x128xf32>
    %17 = arith.truncf %16 : vector<128x128xf32> to vector<128x128xbf16>
    %cst_16 = arith.constant dense<0.000000e+00> : vector<128x128xf32>
    %18 = tpu.matmul %17, %1, %cst_16 {dimension_numbers = #tpu.dot_dimension_numbers<[1], [0], [0], [1], [0, 0, 1, 1], [], []>} : vector<128x128xbf16>, vector<128x128xbf16>, vector<128x128xf32> -> vector<128x128xf32>
    %cst_17 = arith.constant 1.000000e-01 : f32
    %19 = vector.broadcast %cst_17 : f32 to vector<128x128xf32>
    %20 = arith.mulf %19, %18 : vector<128x128xf32>
    %21 = arith.maximumf %18, %20 : vector<128x128xf32>
    %22 = arith.truncf %12 : vector<16x128xf32> to vector<16x128xbf16>
    %23 = arith.truncf %21 : vector<128x128xf32> to vector<128x128xbf16>
    %cst_18 = arith.constant dense<0.000000e+00> : vector<16x128xf32>
    %24 = tpu.matmul %22, %23, %cst_18 {dimension_numbers = #tpu.dot_dimension_numbers<[1], [0], [0], [1], [0, 0, 1, 1], [], []>} : vector<16x128xbf16>, vector<128x128xbf16>, vector<16x128xf32> -> vector<16x128xf32>
    %25 = arith.truncf %24 : vector<16x128xf32> to vector<16x128xbf16>
    %c0_19 = arith.constant 0 : index
    %c0_20 = arith.constant 0 : index
    %c0_21 = arith.constant 0 : index
    %26 = vector.load %arg6[%c0_19, %c0_20, %c0_21] : memref<2x128x128xbf16, #tpu.memory_space<vmem>>, vector<1x128x128xbf16>
    %27 = vector.shape_cast %26 : vector<1x128x128xbf16> to vector<128x128xbf16>
    %cst_22 = arith.constant dense<0.000000e+00> : vector<16x128xf32>
    %28 = tpu.matmul %25, %27, %cst_22 {dimension_numbers = #tpu.dot_dimension_numbers<[1], [0], [0], [1], [0, 0, 1, 1], [], []>} : vector<16x128xbf16>, vector<128x128xbf16>, vector<16x128xf32> -> vector<16x128xf32>
    %29 = arith.addf %28, %12 : vector<16x128xf32>
    %30 = arith.truncf %29 : vector<16x128xf32> to vector<16x128xbf16>
    %c1 = arith.constant 1 : index
    %c0_23 = arith.constant 0 : index
    %c0_24 = arith.constant 0 : index
    %31 = vector.load %arg3[%c1, %c0_23, %c0_24] : memref<2x128x128xbf16, #tpu.memory_space<vmem>>, vector<1x128x128xbf16>
    %32 = vector.shape_cast %31 : vector<1x128x128xbf16> to vector<128x128xbf16>
    %cst_25 = arith.constant dense<0.000000e+00> : vector<16x128xf32>
    %33 = tpu.matmul %30, %32, %cst_25 {dimension_numbers = #tpu.dot_dimension_numbers<[1], [0], [0], [1], [0, 0, 1, 1], [], []>} : vector<16x128xbf16>, vector<128x128xbf16>, vector<16x128xf32> -> vector<16x128xf32>
    %c1_26 = arith.constant 1 : index
    %c0_27 = arith.constant 0 : index
    %c0_28 = arith.constant 0 : index
    %34 = vector.load %arg4[%c1_26, %c0_27, %c0_28] : memref<2x1x128xf32, #tpu.memory_space<vmem>>, vector<1x1x128xf32>
    %35 = vector.shape_cast %34 : vector<1x1x128xf32> to vector<1x128xf32>
    %36 = vector.broadcast %35 : vector<1x128xf32> to vector<16x128xf32>
    %37 = arith.addf %33, %36 : vector<16x128xf32>
    %cst_29 = arith.constant 0.000000e+00 : f32
    %38 = vector.broadcast %cst_29 : f32 to vector<16x128xf32>
    %39 = arith.maximumf %37, %38 : vector<16x128xf32>
    %c1_30 = arith.constant 1 : index
    %c0_31 = arith.constant 0 : index
    %c0_32 = arith.constant 0 : index
    %40 = vector.load %arg5[%c1_30, %c0_31, %c0_32] : memref<2x128x128xbf16, #tpu.memory_space<vmem>>, vector<1x128x128xbf16>
    %41 = vector.shape_cast %40 : vector<1x128x128xbf16> to vector<128x128xbf16>
    %42 = arith.truncf %21 : vector<128x128xf32> to vector<128x128xbf16>
    %cst_33 = arith.constant dense<0.000000e+00> : vector<128x128xf32>
    %43 = tpu.matmul %41, %42, %cst_33 {dimension_numbers = #tpu.dot_dimension_numbers<[1], [0], [0], [1], [0, 0, 1, 1], [], []>} : vector<128x128xbf16>, vector<128x128xbf16>, vector<128x128xf32> -> vector<128x128xf32>
    %44 = arith.truncf %43 : vector<128x128xf32> to vector<128x128xbf16>
    %cst_34 = arith.constant dense<0.000000e+00> : vector<128x128xf32>
    %45 = tpu.matmul %44, %1, %cst_34 {dimension_numbers = #tpu.dot_dimension_numbers<[1], [0], [0], [1], [0, 0, 1, 1], [], []>} : vector<128x128xbf16>, vector<128x128xbf16>, vector<128x128xf32> -> vector<128x128xf32>
    %cst_35 = arith.constant 1.000000e-01 : f32
    %46 = vector.broadcast %cst_35 : f32 to vector<128x128xf32>
    %47 = arith.mulf %46, %45 : vector<128x128xf32>
    %48 = arith.maximumf %45, %47 : vector<128x128xf32>
    %49 = arith.truncf %39 : vector<16x128xf32> to vector<16x128xbf16>
    %50 = arith.truncf %48 : vector<128x128xf32> to vector<128x128xbf16>
    %cst_36 = arith.constant dense<0.000000e+00> : vector<16x128xf32>
    %51 = tpu.matmul %49, %50, %cst_36 {dimension_numbers = #tpu.dot_dimension_numbers<[1], [0], [0], [1], [0, 0, 1, 1], [], []>} : vector<16x128xbf16>, vector<128x128xbf16>, vector<16x128xf32> -> vector<16x128xf32>
    %52 = arith.truncf %51 : vector<16x128xf32> to vector<16x128xbf16>
    %c1_37 = arith.constant 1 : index
    %c0_38 = arith.constant 0 : index
    %c0_39 = arith.constant 0 : index
    %53 = vector.load %arg6[%c1_37, %c0_38, %c0_39] : memref<2x128x128xbf16, #tpu.memory_space<vmem>>, vector<1x128x128xbf16>
    %54 = vector.shape_cast %53 : vector<1x128x128xbf16> to vector<128x128xbf16>
    %cst_40 = arith.constant dense<0.000000e+00> : vector<16x128xf32>
    %55 = tpu.matmul %52, %54, %cst_40 {dimension_numbers = #tpu.dot_dimension_numbers<[1], [0], [0], [1], [0, 0, 1, 1], [], []>} : vector<16x128xbf16>, vector<128x128xbf16>, vector<16x128xf32> -> vector<16x128xf32>
    %56 = arith.addf %55, %39 : vector<16x128xf32>
    %57 = arith.truncf %56 : vector<16x128xf32> to vector<16x128xbf16>
    %c0_41 = arith.constant 0 : index
    %c0_42 = arith.constant 0 : index
    %58 = vector.load %arg7[%c0_41, %c0_42] : memref<128x128xf32, #tpu.memory_space<vmem>>, vector<128x128xf32>
    %59 = arith.addf %45, %58 : vector<128x128xf32>
    %60 = arith.truncf %59 : vector<128x128xf32> to vector<128x128xbf16>
    %cst_43 = arith.constant dense<0.000000e+00> : vector<16x128xf32>
    %61 = tpu.matmul %57, %60, %cst_43 {dimension_numbers = #tpu.dot_dimension_numbers<[1], [0], [0], [1], [0, 0, 1, 1], [], []>} : vector<16x128xbf16>, vector<128x128xbf16>, vector<16x128xf32> -> vector<16x128xf32>
    %c0_44 = arith.constant 0 : index
    %c0_45 = arith.constant 0 : index
    %62 = vector.load %arg8[%c0_44, %c0_45] : memref<16x128xf32, #tpu.memory_space<vmem>>, vector<16x128xf32>
    tpu.vector_store %arg8[%c0_44, %c0_45], %61 {strides = array<i32>} : memref<16x128xf32, #tpu.memory_space<vmem>>, vector<16x128xf32>,
    return
  }
}

</mosaic_0001>

<llo_original>
// kernel: tpu_custom_call.1
$region0: #{tpu_custom_call.1}
  #allocation0 [shape = 'u32[]', space=smem, size = 0x4, offset = 0x4, fixed_abs, tag = 'smem constant byte address 0x4 - core index']
  #allocation1 [shape = 'u32[144,128]{1,0:T(1,128)}', space=vmem, size = 0x12000, scoped, tag = 'internal scratch']
  %s0 = inlined_call_operand.hbm [shape: f32[16,128], index: 0, kind: input, shape index: {}]
  %s1 = inlined_call_operand.hbm [shape: bf16[128,128], index: 1, kind: input, shape index: {}]
  %s2 = inlined_call_operand.hbm [shape: f32[128,128], index: 2, kind: input, shape index: {}]
  %s3 = inlined_call_operand.hbm [shape: bf16[2,128,128], index: 3, kind: input, shape index: {}]
  %s4 = inlined_call_operand.vmem [shape: f32[2,1,128], index: 4, kind: input, shape index: {}]
  %s5 = inlined_call_operand.hbm [shape: bf16[2,128,128], index: 5, kind: input, shape index: {}]
  %s6 = inlined_call_operand.hbm [shape: bf16[2,128,128], index: 6, kind: input, shape index: {}]
  %s7 = inlined_call_operand.hbm [shape: f32[128,128], index: 7, kind: input, shape index: {}]
  %s8 = inlined_call_operand.hbm [shape: f32[16,128], index: 8, kind: output, shape index: {}]
  %s9 = sld [smem:[#allocation0]]
  $region70: #{tpu_custom_call.1} parent=0
    _
  %s11 = ssub.s32 1, %s9
  %s12 = scalar_select 0, %s11, %s9
  $region1: #{tpu_custom_call.1} parent=0
    #allocation2 [shape = 'u8[8192]{0}', space=vmem, size = 0x2000, scoped, tag = 'input window, operand 0, single buffered']
    #allocation3 [shape = 's32[1]{0}', space=sflag, size = 0x4, scoped, tag = 'scoped memory for tpu_custom_call.1']
    #allocation4 [shape = 's32[1]{0}', space=sflag, size = 0x4, scoped, tag = 'scoped memory for tpu_custom_call.1']
    #allocation5 [shape = 'u8[32768]{0}', space=vmem, size = 0x8000, scoped, tag = 'input window, operand 1, single buffered']
    #allocation6 [shape = 's32[1]{0}', space=sflag, size = 0x4, scoped, tag = 'scoped memory for tpu_custom_call.1']
    #allocation7 [shape = 'u8[65536]{0}', space=vmem, size = 0x10000, scoped, tag = 'input window, operand 2, single buffered']
    #allocation8 [shape = 'u8[65536]{0}', space=vmem, size = 0x10000, scoped, tag = 'input window, operand 3, single buffered']
    #allocation9 [shape = 's32[1]{0}', space=sflag, size = 0x4, scoped, tag = 'scoped memory for tpu_custom_call.1']
    #allocation10 [shape = 'u8[65536]{0}', space=vmem, size = 0x10000, scoped, tag = 'input window, operand 5, single buffered']
    #allocation11 [shape = 'u8[65536]{0}', space=vmem, size = 0x10000, scoped, tag = 'input window, operand 6, single buffered']
    #allocation12 [shape = 's32[1]{0}', space=sflag, size = 0x4, scoped, tag = 'scoped memory for tpu_custom_call.1']
    #allocation13 [shape = 'u8[65536]{0}', space=vmem, size = 0x10000, scoped, tag = 'input window, operand 7, single buffered']
    #allocation14 [shape = 'u8[8192]{0}', space=vmem, size = 0x2000, scoped, tag = 'output window, operand 0, single buffered']
    %13 = vsyncpa [#allocation3], 0
    %14 = vsyncpa [#allocation6], 0
    %15 = vsyncpa [#allocation9], 0
    %16 = vsyncpa [#allocation12], 0
    %17 = vsyncpa [#allocation4], 0
    // Predicated region
    $region2: #{tpu_custom_call.1} parent=1 // pred_check
      _
    $region3: #{tpu_custom_call.1} parent=1 // pred_check_branch
      %19 = sbr.rel (0) target = $region5
    $region4: #{tpu_custom_call.1} parent=1 // pred_region
      %s21 = ssub.s32 256, 256
      %22 = vsyncadd [#allocation3], %s21
      %s23 = sshll.u32 [#allocation2], 4
      %s24 = int_to_ptr.vmem [resolvable:$true] %s23
      %29 = dma.hbm_to_vmem [thread:$0]  %s0, 256, %s24, [#allocation3], 128, 128, 8
    $region5: #{tpu_custom_call.1} parent=1 // pred_fallthru
      _
    // Predicated region
    $region6: #{tpu_custom_call.1} parent=1 // pred_check
      _
    $region7: #{tpu_custom_call.1} parent=1 // pred_check_branch
      %31 = sbr.rel (0) target = $region9
    $region8: #{tpu_custom_call.1} parent=1 // pred_region
      %s33 = ssub.s32 1024, 1024
      %34 = vsyncadd [#allocation6], %s33
      %s35 = sshll.u32 [#allocation5], 4
      %s36 = int_to_ptr.vmem [resolvable:$true] %s35
      %41 = dma.hbm_to_vmem [thread:$0]  %s1, 1024, %s36, [#allocation6], 64, 64, 4
    $region9: #{tpu_custom_call.1} parent=1 // pred_fallthru
      _
    // Predicated region
    $region10: #{tpu_custom_call.1} parent=1 // pred_check
      _
    $region11: #{tpu_custom_call.1} parent=1 // pred_check_branch
      %43 = sbr.rel (0) target = $region13
    $region12: #{tpu_custom_call.1} parent=1 // pred_region
      %s45 = ssub.s32 2048, 2048
      %46 = vsyncadd [#allocation6], %s45
      %s47 = sshll.u32 [#allocation7], 4
      %s48 = int_to_ptr.vmem [resolvable:$true] %s47
      %53 = dma.hbm_to_vmem [thread:$0]  %s2, 2048, %s48, [#allocation6], 128, 128, 8
    $region13: #{tpu_custom_call.1} parent=1 // pred_fallthru
      _
    // Predicated region
    $region14: #{tpu_custom_call.1} parent=1 // pred_check
      _
    $region15: #{tpu_custom_call.1} parent=1 // pred_check_branch
      %55 = sbr.rel (0) target = $region17
    $region16: #{tpu_custom_call.1} parent=1 // pred_region
      %s57 = ssub.s32 2048, 2048
      %58 = vsyncadd [#allocation9], %s57
      %s59 = sshll.u32 [#allocation8], 4
      %s60 = int_to_ptr.vmem [resolvable:$true] %s59
      %65 = dma.hbm_to_vmem [thread:$0]  %s3, 2048, %s60, [#allocation9], 64, 64, 4
    $region17: #{tpu_custom_call.1} parent=1 // pred_fallthru
      _
    // Predicated region
    $region18: #{tpu_custom_call.1} parent=1 // pred_check
      _
    $region19: #{tpu_custom_call.1} parent=1 // pred_check_branch
      %67 = sbr.rel (0) target = $region21
    $region20: #{tpu_custom_call.1} parent=1 // pred_region
      _
    $region21: #{tpu_custom_call.1} parent=1 // pred_fallthru
      _
    // Predicated region
    $region22: #{tpu_custom_call.1} parent=1 // pred_check
      _
    $region23: #{tpu_custom_call.1} parent=1 // pred_check_branch
      %69 = sbr.rel (0) target = $region25
    $region24: #{tpu_custom_call.1} parent=1 // pred_region
      %s71 = ssub.s32 2048, 2048
      %72 = vsyncadd [#allocation9], %s71
      %s73 = sshll.u32 [#allocation10], 4
      %s74 = int_to_ptr.vmem [resolvable:$true] %s73
      %79 = dma.hbm_to_vmem [thread:$0]  %s5, 2048, %s74, [#allocation9], 64, 64, 4
    $region25: #{tpu_custom_call.1} parent=1 // pred_fallthru
      _
    // Predicated region
    $region26: #{tpu_custom_call.1} parent=1 // pred_check
      _
    $region27: #{tpu_custom_call.1} parent=1 // pred_check_branch
      %81 = sbr.rel (0) target = $region29
    $region28: #{tpu_custom_call.1} parent=1 // pred_region
      %s83 = ssub.s32 2048, 2048
      %84 = vsyncadd [#allocation12], %s83
      %s85 = sshll.u32 [#allocation11], 4
      %s86 = int_to_ptr.vmem [resolvable:$true] %s85
      %91 = dma.hbm_to_vmem [thread:$0]  %s6, 2048, %s86, [#allocation12], 64, 64, 4
    $region29: #{tpu_custom_call.1} parent=1 // pred_fallthru
      _
    // Predicated region
    $region30: #{tpu_custom_call.1} parent=1 // pred_check
      _
    $region31: #{tpu_custom_call.1} parent=1 // pred_check_branch
      %93 = sbr.rel (0) target = $region33
    $region32: #{tpu_custom_call.1} parent=1 // pred_region
      %s95 = ssub.s32 2048, 2048
      %96 = vsyncadd [#allocation12], %s95
      %s97 = sshll.u32 [#allocation13], 4
      %s98 = int_to_ptr.vmem [resolvable:$true] %s97
      %103 = dma.hbm_to_vmem [thread:$0]  %s7, 2048, %s98, [#allocation12], 128, 128, 8
    $region33: #{tpu_custom_call.1} parent=1 // pred_fallthru
      _
    // Predicated region
    $region34: #{tpu_custom_call.1} parent=1 // pred_check
      _
    $region35: #{tpu_custom_call.1} parent=1 // pred_check_branch
      %105 = sbr.rel (0) target = $region37
    $region36: #{tpu_custom_call.1} parent=1 // pred_region
      %106 = dma.done [#allocation3], 256
    $region37: #{tpu_custom_call.1} parent=1 // pred_fallthru
      _
    // Predicated region
    $region38: #{tpu_custom_call.1} parent=1 // pred_check
      _
    $region39: #{tpu_custom_call.1} parent=1 // pred_check_branch
      %108 = sbr.rel (0) target = $region41
    $region40: #{tpu_custom_call.1} parent=1 // pred_region
      %109 = dma.done [#allocation6], 1024
    $region41: #{tpu_custom_call.1} parent=1 // pred_fallthru
      _
    // Predicated region
    $region42: #{tpu_custom_call.1} parent=1 // pred_check
      _
    $region43: #{tpu_custom_call.1} parent=1 // pred_check_branch
      %111 = sbr.rel (0) target = $region45
    $region44: #{tpu_custom_call.1} parent=1 // pred_region
      %112 = dma.done [#allocation6], 2048
    $region45: #{tpu_custom_call.1} parent=1 // pred_fallthru
      _
    // Predicated region
    $region46: #{tpu_custom_call.1} parent=1 // pred_check
      _
    $region47: #{tpu_custom_call.1} parent=1 // pred_check_branch
      %114 = sbr.rel (0) target = $region49
    $region48: #{tpu_custom_call.1} parent=1 // pred_region
      %115 = dma.done [#allocation9], 2048
    $region49: #{tpu_custom_call.1} parent=1 // pred_fallthru
      _
    // Predicated region
    $region50: #{tpu_custom_call.1} parent=1 // pred_check
      _
    $region51: #{tpu_custom_call.1} parent=1 // pred_check_branch
      %117 = sbr.rel (0) target = $region53
    $region52: #{tpu_custom_call.1} parent=1 // pred_region
      %118 = dma.done [#allocation9], 2048
    $region53: #{tpu_custom_call.1} parent=1 // pred_fallthru
      _
    // Predicated region
    $region54: #{tpu_custom_call.1} parent=1 // pred_check
      _
    $region55: #{tpu_custom_call.1} parent=1 // pred_check_branch
      %120 = sbr.rel (0) target = $region57
    $region56: #{tpu_custom_call.1} parent=1 // pred_region
      %121 = dma.done [#allocation12], 2048
    $region57: #{tpu_custom_call.1} parent=1 // pred_fallthru
      _
    // Predicated region
    $region58: #{tpu_custom_call.1} parent=1 // pred_check
      _
    $region59: #{tpu_custom_call.1} parent=1 // pred_check_branch
      %123 = sbr.rel (0) target = $region61
    $region60: #{tpu_custom_call.1} parent=1 // pred_region
      %124 = dma.done [#allocation12], 2048
    $region61: #{tpu_custom_call.1} parent=1 // pred_fallthru
      _
    %v126 = vld [vmem:[#allocation2] sm:$0xff]
    %v127 = vld [vmem:[#allocation2 + $0x8] sm:$0xff]
    %v128 = vld [vmem:[#allocation5] sm:$0xf]
    %v129 = vld [vmem:[#allocation5 + $0x4] sm:$0xf]
    %v130 = vld [vmem:[#allocation5 + $0x8] sm:$0xf]
    %v131 = vld [vmem:[#allocation5 + $0xc] sm:$0xf]
    %v132 = vld [vmem:[#allocation5 + $0x10] sm:$0xf]
    %v133 = vld [vmem:[#allocation5 + $0x14] sm:$0xf]
    %v134 = vld [vmem:[#allocation5 + $0x18] sm:$0xf]
    %v135 = vld [vmem:[#allocation5 + $0x1c] sm:$0xf]
    %v136 = vld [vmem:[#allocation5 + $0x20] sm:$0xf]
    %v137 = vld [vmem:[#allocation5 + $0x24] sm:$0xf]
    %v138 = vld [vmem:[#allocation5 + $0x28] sm:$0xf]
    %v139 = vld [vmem:[#allocation5 + $0x2c] sm:$0xf]
    %v140 = vld [vmem:[#allocation5 + $0x30] sm:$0xf]
    %v141 = vld [vmem:[#allocation5 + $0x34] sm:$0xf]
    %v142 = vld [vmem:[#allocation5 + $0x38] sm:$0xf]
    %v143 = vld [vmem:[#allocation5 + $0x3c] sm:$0xf]
    %v144 = vld [vmem:[#allocation7] sm:$0xff]
    %v145 = vld [vmem:[#allocation7 + $0x8] sm:$0xff]
    %v146 = vld [vmem:[#allocation7 + $0x10] sm:$0xff]
    %v147 = vld [vmem:[#allocation7 + $0x18] sm:$0xff]
    %v148 = vld [vmem:[#allocation7 + $0x20] sm:$0xff]
    %v149 = vld [vmem:[#allocation7 + $0x28] sm:$0xff]
    %v150 = vld [vmem:[#allocation7 + $0x30] sm:$0xff]
    %v151 = vld [vmem:[#allocation7 + $0x38] sm:$0xff]
    %v152 = vld [vmem:[#allocation7 + $0x40] sm:$0xff]
    %v153 = vld [vmem:[#allocation7 + $0x48] sm:$0xff]
    %v154 = vld [vmem:[#allocation7 + $0x50] sm:$0xff]
    %v155 = vld [vmem:[#allocation7 + $0x58] sm:$0xff]
    %v156 = vld [vmem:[#allocation7 + $0x60] sm:$0xff]
    %v157 = vld [vmem:[#allocation7 + $0x68] sm:$0xff]
    %v158 = vld [vmem:[#allocation7 + $0x70] sm:$0xff]
    %v159 = vld [vmem:[#allocation7 + $0x78] sm:$0xff]
    %v160 = vpack.c.bf16 %v127, %v126
    %v161 = vld [vmem:[#allocation8] sm:$0xf]
    %v162 = vld [vmem:[#allocation8 + $0x4] sm:$0xf]
    %v163 = vld [vmem:[#allocation8 + $0x8] sm:$0xf]
    %v164 = vld [vmem:[#allocation8 + $0xc] sm:$0xf]
    %v165 = vld [vmem:[#allocation8 + $0x10] sm:$0xf]
    %v166 = vld [vmem:[#allocation8 + $0x14] sm:$0xf]
    %v167 = vld [vmem:[#allocation8 + $0x18] sm:$0xf]
    %v168 = vld [vmem:[#allocation8 + $0x1c] sm:$0xf]
    %v169 = vld [vmem:[#allocation8 + $0x20] sm:$0xf]
    %v170 = vld [vmem:[#allocation8 + $0x24] sm:$0xf]
    %v171 = vld [vmem:[#allocation8 + $0x28] sm:$0xf]
    %v172 = vld [vmem:[#allocation8 + $0x2c] sm:$0xf]
    %v173 = vld [vmem:[#allocation8 + $0x30] sm:$0xf]
    %v174 = vld [vmem:[#allocation8 + $0x34] sm:$0xf]
    %v175 = vld [vmem:[#allocation8 + $0x38] sm:$0xf]
    %v176 = vld [vmem:[#allocation8 + $0x3c] sm:$0xf]
    %v177 = vld [vmem:[%s4] sm:$0x1]
    %v179 = vlaneseq
    %v180 = vshrl.u32 %v179, 7
    %v181 = vsub.s32 0, %v180
    %v182 = vrot.slane %v177, %v181
    %v200 = vunpack.c.l.b16 %v161
    %v201 = vunpack.c.l.b16 %v162
    %v202 = vunpack.c.l.b16 %v163
    %v203 = vunpack.c.l.b16 %v164
    %v204 = vunpack.c.l.b16 %v165
    %v205 = vunpack.c.l.b16 %v166
    %v206 = vunpack.c.l.b16 %v167
    %v207 = vunpack.c.l.b16 %v168
    %v208 = vunpack.c.l.b16 %v169
    %v209 = vunpack.c.l.b16 %v170
    %v210 = vunpack.c.l.b16 %v171
    %v211 = vunpack.c.l.b16 %v172
    %v212 = vunpack.c.l.b16 %v173
    %v213 = vunpack.c.l.b16 %v174
    %v214 = vunpack.c.l.b16 %v175
    %v215 = vunpack.c.l.b16 %v176
    %v216 = vpack.c.b16 %v201, %v200
    %v217 = vpack.c.b16 %v203, %v202
    %v218 = vpack.c.b16 %v205, %v204
    %v219 = vpack.c.b16 %v207, %v206
    %v220 = vpack.c.b16 %v209, %v208
    %v221 = vpack.c.b16 %v211, %v210
    %v222 = vpack.c.b16 %v213, %v212
    %v223 = vpack.c.b16 %v215, %v214
    %232 = vmatprep.subr.bf16.mxu0 0
    %233 = vmatpush1.bf16.msra.mxu0 %v223
    %234 = vmatprep.subr.bf16.mxu0 0
    %235 = vmatpush1.bf16.msra.mxu0 %v222
    %236 = vmatprep.subr.bf16.mxu0 0
    %237 = vmatpush1.bf16.msra.mxu0 %v221
    %238 = vmatprep.subr.bf16.mxu0 0
    %239 = vmatpush1.bf16.msra.mxu0 %v220
    %240 = vmatprep.subr.bf16.mxu0 0
    %241 = vmatpush1.bf16.msra.mxu0 %v219
    %242 = vmatprep.subr.bf16.mxu0 0
    %243 = vmatpush1.bf16.msra.mxu0 %v218
    %244 = vmatprep.subr.bf16.mxu0 0
    %245 = vmatpush1.bf16.msra.mxu0 %v217
    %246 = vmatprep.subr.bf16.mxu0 0
    %247 = vmatpush1.bf16.msra.mxu0 %v216
    %248 = vmatprep.subr.bf16.mxu0 0
    %249 = vmatpush2.bf16.msra.mxu0 0
    %250 = vmatprep.subr.bf16.mxu0 0
    %251 = vmatpush2.bf16.msra.mxu0 0
    %252 = vmatprep.subr.bf16.mxu0 0
    %253 = vmatpush2.bf16.msra.mxu0 0
    %254 = vmatprep.subr.bf16.mxu0 0
    %255 = vmatpush2.bf16.msra.mxu0 0
    %256 = vmatprep.subr.bf16.mxu0 0
    %257 = vmatpush2.bf16.msra.mxu0 0
    %258 = vmatprep.subr.bf16.mxu0 0
    %259 = vmatpush2.bf16.msra.mxu0 0
    %260 = vmatprep.subr.bf16.mxu0 0
    %261 = vmatpush2.bf16.msra.mxu0 0
    %262 = vmatprep.subr.bf16.mxu0 0
    %263 = vmatpush2.bf16.msra.mxu0 0
    %264 = vmatprep.mubr.bf16.mxu0 0
    %265 = vmatmul.mubr.bf16.gmra.mxu0 %v160
    %v266 = vpop.f32.mrf.mxu0
    %v267 = vadd.f32 %v182, %v266
    %v268 = vpop.f32.mrf.mxu0
    %v269 = vpop.f32.mrf.mxu0
    %v270 = vadd.f32 %v182, %v269
    %v271 = vpop.f32.mrf.mxu0
    %272 = vdwg.mxu0
    %v273 = vmax.f32 %v267, 0.0
    %v274 = vmax.f32 %v270, 0.0
    %v275 = vld [vmem:[#allocation10] sm:$0xf]
    %v276 = vld [vmem:[#allocation10 + $0x4] sm:$0xf]
    %v277 = vld [vmem:[#allocation10 + $0x8] sm:$0xf]
    %v278 = vld [vmem:[#allocation10 + $0xc] sm:$0xf]
    %v279 = vld [vmem:[#allocation10 + $0x10] sm:$0xf]
    %v280 = vld [vmem:[#allocation10 + $0x14] sm:$0xf]
    %v281 = vld [vmem:[#allocation10 + $0x18] sm:$0xf]
    %v282 = vld [vmem:[#allocation10 + $0x1c] sm:$0xf]
    %v283 = vld [vmem:[#allocation10 + $0x20] sm:$0xf]
    %v284 = vld [vmem:[#allocation10 + $0x24] sm:$0xf]
    %v285 = vld [vmem:[#allocation10 + $0x28] sm:$0xf]
    %v286 = vld [vmem:[#allocation10 + $0x2c] sm:$0xf]
    %v287 = vld [vmem:[#allocation10 + $0x30] sm:$0xf]
    %v288 = vld [vmem:[#allocation10 + $0x34] sm:$0xf]
    %v289 = vld [vmem:[#allocation10 + $0x38] sm:$0xf]
    %v290 = vld [vmem:[#allocation10 + $0x3c] sm:$0xf]
    %v291 = vpack.c.bf16 %v145, %v144
    %v292 = vpack.c.bf16 %v147, %v146
    %v293 = vpack.c.bf16 %v149, %v148
    %v294 = vpack.c.bf16 %v151, %v150
    %v295 = vpack.c.bf16 %v153, %v152
    %v296 = vpack.c.bf16 %v155, %v154
    %v297 = vpack.c.bf16 %v157, %v156
    %v298 = vpack.c.bf16 %v159, %v158
    %v315 = vunpack.c.l.b16 %v275
    %v316 = vunpack.c.l.b16 %v276
    %v317 = vunpack.c.l.b16 %v277
    %v318 = vunpack.c.l.b16 %v278
    %v319 = vunpack.c.l.b16 %v279
    %v320 = vunpack.c.l.b16 %v280
    %v321 = vunpack.c.l.b16 %v281
    %v322 = vunpack.c.l.b16 %v282
    %v323 = vunpack.c.l.b16 %v283
    %v324 = vunpack.c.l.b16 %v284
    %v325 = vunpack.c.l.b16 %v285
    %v326 = vunpack.c.l.b16 %v286
    %v327 = vunpack.c.l.b16 %v287
    %v328 = vunpack.c.l.b16 %v288
    %v329 = vunpack.c.l.b16 %v289
    %v330 = vunpack.c.l.b16 %v290
    %v331 = vpack.c.b16 %v316, %v315
    %v332 = vpack.c.b16 %v318, %v317
    %v333 = vpack.c.b16 %v320, %v319
    %v334 = vpack.c.b16 %v322, %v321
    %v335 = vpack.c.b16 %v324, %v323
    %v336 = vpack.c.b16 %v326, %v325
    %v337 = vpack.c.b16 %v328, %v327
    %v338 = vpack.c.b16 %v330, %v329
    %347 = vmatprep.subr.bf16.mxu0 0
    %348 = vmatpush1.bf16.msra.mxu0 %v298
    %349 = vmatprep.subr.bf16.mxu0 0
    %350 = vmatpush1.bf16.msra.mxu0 %v297
    %351 = vmatprep.subr.bf16.mxu0 0
    %352 = vmatpush1.bf16.msra.mxu0 %v296
    %353 = vmatprep.subr.bf16.mxu0 0
    %354 = vmatpush1.bf16.msra.mxu0 %v295
    %355 = vmatprep.subr.bf16.mxu0 0
    %356 = vmatpush1.bf16.msra.mxu0 %v294
    %357 = vmatprep.subr.bf16.mxu0 0
    %358 = vmatpush1.bf16.msra.mxu0 %v293
    %359 = vmatprep.subr.bf16.mxu0 0
    %360 = vmatpush1.bf16.msra.mxu0 %v292
    %361 = vmatprep.subr.bf16.mxu0 0
    %362 = vmatpush1.bf16.msra.mxu0 %v291
    %363 = vmatprep.subr.bf16.mxu0 0
    %364 = vmatpush2.bf16.msra.mxu0 0
    %365 = vmatprep.subr.bf16.mxu0 0
    %366 = vmatpush2.bf16.msra.mxu0 0
    %367 = vmatprep.subr.bf16.mxu0 0
    %368 = vmatpush2.bf16.msra.mxu0 0
    %369 = vmatprep.subr.bf16.mxu0 0
    %370 = vmatpush2.bf16.msra.mxu0 0
    %371 = vmatprep.subr.bf16.mxu0 0
    %372 = vmatpush2.bf16.msra.mxu0 0
    %373 = vmatprep.subr.bf16.mxu0 0
    %374 = vmatpush2.bf16.msra.mxu0 0
    %375 = vmatprep.subr.bf16.mxu0 0
    %376 = vmatpush2.bf16.msra.mxu0 0
    %377 = vmatprep.subr.bf16.mxu0 0
    %378 = vmatpush2.bf16.msra.mxu0 0
    %379 = vmatprep.mubr.bf16.mxu0 0
    %380 = vmatmul.mubr.bf16.gmra.mxu0 %v331
    %v381 = vpop.f32.mrf.mxu0
    %v382 = vadd.f32 0.0, %v381
    %v383 = vpop.f32.mrf.mxu0
    %v384 = vpop.f32.mrf.mxu0
    %v385 = vadd.f32 0.0, %v384
    %v386 = vpop.f32.mrf.mxu0
    %387 = vmatprep.mubr.bf16.mxu0 0
    %388 = vmatmul.mubr.bf16.gmra.mxu0 %v332
    %v389 = vpop.f32.mrf.mxu0
    %v390 = vadd.f32 0.0, %v389
    %v391 = vpop.f32.mrf.mxu0
    %v392 = vpop.f32.mrf.mxu0
    %v393 = vadd.f32 0.0, %v392
    %v394 = vpop.f32.mrf.mxu0
    %395 = vmatprep.mubr.bf16.mxu0 0
    %396 = vmatmul.mubr.bf16.gmra.mxu0 %v333
    %v397 = vpop.f32.mrf.mxu0
    %v398 = vadd.f32 0.0, %v397
    %v399 = vpop.f32.mrf.mxu0
    %v400 = vpop.f32.mrf.mxu0
    %v401 = vadd.f32 0.0, %v400
    %v402 = vpop.f32.mrf.mxu0
    %403 = vmatprep.mubr.bf16.mxu0 0
    %404 = vmatmul.mubr.bf16.gmra.mxu0 %v334
    %v405 = vpop.f32.mrf.mxu0
    %v406 = vadd.f32 0.0, %v405
    %v407 = vpop.f32.mrf.mxu0
    %v408 = vpop.f32.mrf.mxu0
    %v409 = vadd.f32 0.0, %v408
    %v410 = vpop.f32.mrf.mxu0
    %411 = vmatprep.mubr.bf16.mxu0 0
    %412 = vmatmul.mubr.bf16.gmra.mxu0 %v335
    %v413 = vpop.f32.mrf.mxu0
    %v414 = vadd.f32 0.0, %v413
    %v415 = vpop.f32.mrf.mxu0
    %v416 = vpop.f32.mrf.mxu0
    %v417 = vadd.f32 0.0, %v416
    %v418 = vpop.f32.mrf.mxu0
    %419 = vmatprep.mubr.bf16.mxu0 0
    %420 = vmatmul.mubr.bf16.gmra.mxu0 %v336
    %v421 = vpop.f32.mrf.mxu0
    %v422 = vadd.f32 0.0, %v421
    %v423 = vpop.f32.mrf.mxu0
    %v424 = vpop.f32.mrf.mxu0
    %v425 = vadd.f32 0.0, %v424
    %v426 = vpop.f32.mrf.mxu0
    %427 = vmatprep.mubr.bf16.mxu0 0
    %428 = vmatmul.mubr.bf16.gmra.mxu0 %v337
    %v429 = vpop.f32.mrf.mxu0
    %v430 = vadd.f32 0.0, %v429
    %v431 = vpop.f32.mrf.mxu0
    %v432 = vpop.f32.mrf.mxu0
    %v433 = vadd.f32 0.0, %v432
    %v434 = vpop.f32.mrf.mxu0
    %435 = vmatprep.mubr.bf16.mxu0 0
    %436 = vmatmul.mubr.bf16.gmra.mxu0 %v338
    %v437 = vpop.f32.mrf.mxu0
    %v438 = vadd.f32 0.0, %v437
    %v439 = vpop.f32.mrf.mxu0
    %v440 = vpop.f32.mrf.mxu0
    %v441 = vadd.f32 0.0, %v440
    %v442 = vpop.f32.mrf.mxu0
    %443 = vdwg.mxu0
    %v444 = vpack.c.bf16 %v385, %v382
    %v445 = vpack.c.bf16 %v393, %v390
    %v446 = vpack.c.bf16 %v401, %v398
    %v447 = vpack.c.bf16 %v409, %v406
    %v448 = vpack.c.bf16 %v417, %v414
    %v449 = vpack.c.bf16 %v425, %v422
    %v450 = vpack.c.bf16 %v433, %v430
    %v451 = vpack.c.bf16 %v441, %v438
    %v468 = vunpack.c.l.b16 %v128
    %v469 = vunpack.c.l.b16 %v129
    %v470 = vunpack.c.l.b16 %v130
    %v471 = vunpack.c.l.b16 %v131
    %v472 = vunpack.c.l.b16 %v132
    %v473 = vunpack.c.l.b16 %v133
    %v474 = vunpack.c.l.b16 %v134
    %v475 = vunpack.c.l.b16 %v135
    %v476 = vunpack.c.l.b16 %v136
    %v477 = vunpack.c.l.b16 %v137
    %v478 = vunpack.c.l.b16 %v138
    %v479 = vunpack.c.l.b16 %v139
    %v480 = vunpack.c.l.b16 %v140
    %v481 = vunpack.c.l.b16 %v141
    %v482 = vunpack.c.l.b16 %v142
    %v483 = vunpack.c.l.b16 %v143
    %v484 = vpack.c.b16 %v469, %v468
    %v485 = vpack.c.b16 %v471, %v470
    %v486 = vpack.c.b16 %v473, %v472
    %v487 = vpack.c.b16 %v475, %v474
    %v488 = vpack.c.b16 %v477, %v476
    %v489 = vpack.c.b16 %v479, %v478
    %v490 = vpack.c.b16 %v481, %v480
    %v491 = vpack.c.b16 %v483, %v482
    %500 = vmatprep.subr.bf16.mxu0 0
    %501 = vmatpush1.bf16.msra.mxu0 %v491
    %502 = vmatprep.subr.bf16.mxu0 0
    %503 = vmatpush1.bf16.msra.mxu0 %v490
    %504 = vmatprep.subr.bf16.mxu0 0
    %505 = vmatpush1.bf16.msra.mxu0 %v489
    %506 = vmatprep.subr.bf16.mxu0 0
    %507 = vmatpush1.bf16.msra.mxu0 %v488
    %508 = vmatprep.subr.bf16.mxu0 0
    %509 = vmatpush1.bf16.msra.mxu0 %v487
    %510 = vmatprep.subr.bf16.mxu0 0
    %511 = vmatpush1.bf16.msra.mxu0 %v486
    %512 = vmatprep.subr.bf16.mxu0 0
    %513 = vmatpush1.bf16.msra.mxu0 %v485
    %514 = vmatprep.subr.bf16.mxu0 0
    %515 = vmatpush1.bf16.msra.mxu0 %v484
    %516 = vmatprep.subr.bf16.mxu0 0
    %517 = vmatpush2.bf16.msra.mxu0 0
    %518 = vmatprep.subr.bf16.mxu0 0
    %519 = vmatpush2.bf16.msra.mxu0 0
    %520 = vmatprep.subr.bf16.mxu0 0
    %521 = vmatpush2.bf16.msra.mxu0 0
    %522 = vmatprep.subr.bf16.mxu0 0
    %523 = vmatpush2.bf16.msra.mxu0 0
    %524 = vmatprep.subr.bf16.mxu0 0
    %525 = vmatpush2.bf16.msra.mxu0 0
    %526 = vmatprep.subr.bf16.mxu0 0
    %527 = vmatpush2.bf16.msra.mxu0 0
    %528 = vmatprep.subr.bf16.mxu0 0
    %529 = vmatpush2.bf16.msra.mxu0 0
    %530 = vmatprep.subr.bf16.mxu0 0
    %531 = vmatpush2.bf16.msra.mxu0 0
    %532 = vmatprep.mubr.bf16.mxu0 0
    %533 = vmatmul.mubr.bf16.gmra.mxu0 %v444
    %v534 = vpop.f32.mrf.mxu0
    %v535 = vadd.f32 0.0, %v534
    %v536 = vpop.f32.mrf.mxu0
    %v537 = vpop.f32.mrf.mxu0
    %v538 = vadd.f32 0.0, %v537
    %v539 = vpop.f32.mrf.mxu0
    %540 = vmatprep.mubr.bf16.mxu0 0
    %541 = vmatmul.mubr.bf16.gmra.mxu0 %v445
    %v542 = vpop.f32.mrf.mxu0
    %v543 = vadd.f32 0.0, %v542
    %v544 = vpop.f32.mrf.mxu0
    %v545 = vpop.f32.mrf.mxu0
    %v546 = vadd.f32 0.0, %v545
    %v547 = vpop.f32.mrf.mxu0
    %548 = vmatprep.mubr.bf16.mxu0 0
    %549 = vmatmul.mubr.bf16.gmra.mxu0 %v446
    %v550 = vpop.f32.mrf.mxu0
    %v551 = vadd.f32 0.0, %v550
    %v552 = vpop.f32.mrf.mxu0
    %v553 = vpop.f32.mrf.mxu0
    %v554 = vadd.f32 0.0, %v553
    %v555 = vpop.f32.mrf.mxu0
    %556 = vmatprep.mubr.bf16.mxu0 0
    %557 = vmatmul.mubr.bf16.gmra.mxu0 %v447
    %v558 = vpop.f32.mrf.mxu0
    %v559 = vadd.f32 0.0, %v558
    %v560 = vpop.f32.mrf.mxu0
    %v561 = vpop.f32.mrf.mxu0
    %v562 = vadd.f32 0.0, %v561
    %v563 = vpop.f32.mrf.mxu0
    %564 = vmatprep.mubr.bf16.mxu0 0
    %565 = vmatmul.mubr.bf16.gmra.mxu0 %v448
    %v566 = vpop.f32.mrf.mxu0
    %v567 = vadd.f32 0.0, %v566
    %v568 = vpop.f32.mrf.mxu0
    %v569 = vpop.f32.mrf.mxu0
    %v570 = vadd.f32 0.0, %v569
    %v571 = vpop.f32.mrf.mxu0
    %572 = vmatprep.mubr.bf16.mxu0 0
    %573 = vmatmul.mubr.bf16.gmra.mxu0 %v449
    %v574 = vpop.f32.mrf.mxu0
    %v575 = vadd.f32 0.0, %v574
    %v576 = vpop.f32.mrf.mxu0
    %v577 = vpop.f32.mrf.mxu0
    %v578 = vadd.f32 0.0, %v577
    %v579 = vpop.f32.mrf.mxu0
    %580 = vmatprep.mubr.bf16.mxu0 0
    %581 = vmatmul.mubr.bf16.gmra.mxu0 %v450
    %v582 = vpop.f32.mrf.mxu0
    %v583 = vadd.f32 0.0, %v582
    %v584 = vpop.f32.mrf.mxu0
    %v585 = vpop.f32.mrf.mxu0
    %v586 = vadd.f32 0.0, %v585
    %v587 = vpop.f32.mrf.mxu0
    %588 = vmatprep.mubr.bf16.mxu0 0
    %589 = vmatmul.mubr.bf16.gmra.mxu0 %v451
    %v590 = vpop.f32.mrf.mxu0
    %v591 = vadd.f32 0.0, %v590
    %v592 = vpop.f32.mrf.mxu0
    %v593 = vpop.f32.mrf.mxu0
    %v594 = vadd.f32 0.0, %v593
    %v595 = vpop.f32.mrf.mxu0
    %596 = vdwg.mxu0
    %v597 = vmul.f32 %v535, 0.1
    %v598 = vmul.f32 %v538, 0.1
    %v599 = vmul.f32 %v543, 0.1
    %v600 = vmul.f32 %v546, 0.1
    %v601 = vmul.f32 %v551, 0.1
    %v602 = vmul.f32 %v554, 0.1
    %v603 = vmul.f32 %v559, 0.1
    %v604 = vmul.f32 %v562, 0.1
    %v605 = vmul.f32 %v567, 0.1
    %v606 = vmul.f32 %v570, 0.1
    %v607 = vmul.f32 %v575, 0.1
    %v608 = vmul.f32 %v578, 0.1
    %v609 = vmul.f32 %v583, 0.1
    %v610 = vmul.f32 %v586, 0.1
    %v611 = vmul.f32 %v591, 0.1
    %v612 = vmul.f32 %v594, 0.1
    %v613 = vmax.f32 %v535, %v597
    %v614 = vmax.f32 %v538, %v598
    %v615 = vmax.f32 %v543, %v599
    %v616 = vmax.f32 %v546, %v600
    %v617 = vmax.f32 %v551, %v601
    %v618 = vmax.f32 %v554, %v602
    %v619 = vmax.f32 %v559, %v603
    %v620 = vmax.f32 %v562, %v604
    %v621 = vmax.f32 %v567, %v605
    %v622 = vmax.f32 %v570, %v606
    %v623 = vmax.f32 %v575, %v607
    %v624 = vmax.f32 %v578, %v608
    %v625 = vmax.f32 %v583, %v609
    %v626 = vmax.f32 %v586, %v610
    %v627 = vmax.f32 %v591, %v611
    %v628 = vmax.f32 %v594, %v612
    %v629 = vpack.c.bf16 %v274, %v273
    %v630 = vpack.c.bf16 %v614, %v613
    %v631 = vpack.c.bf16 %v616, %v615
    %v632 = vpack.c.bf16 %v618, %v617
    %v633 = vpack.c.bf16 %v620, %v619
    %v634 = vpack.c.bf16 %v622, %v621
    %v635 = vpack.c.bf16 %v624, %v623
    %v636 = vpack.c.bf16 %v626, %v625
    %v637 = vpack.c.bf16 %v628, %v627
    %638 = vmatprep.subr.bf16.mxu0 0
    %639 = vmatpush1.bf16.msra.mxu0 %v637
    %640 = vmatprep.subr.bf16.mxu0 0
    %641 = vmatpush1.bf16.msra.mxu0 %v636
    %642 = vmatprep.subr.bf16.mxu0 0
    %643 = vmatpush1.bf16.msra.mxu0 %v635
    %644 = vmatprep.subr.bf16.mxu0 0
    %645 = vmatpush1.bf16.msra.mxu0 %v634
    %646 = vmatprep.subr.bf16.mxu0 0
    %647 = vmatpush1.bf16.msra.mxu0 %v633
    %648 = vmatprep.subr.bf16.mxu0 0
    %649 = vmatpush1.bf16.msra.mxu0 %v632
    %650 = vmatprep.subr.bf16.mxu0 0
    %651 = vmatpush1.bf16.msra.mxu0 %v631
    %652 = vmatprep.subr.bf16.mxu0 0
    %653 = vmatpush1.bf16.msra.mxu0 %v630
    %654 = vmatprep.subr.bf16.mxu0 0
    %655 = vmatpush2.bf16.msra.mxu0 0
    %656 = vmatprep.subr.bf16.mxu0 0
    %657 = vmatpush2.bf16.msra.mxu0 0
    %658 = vmatprep.subr.bf16.mxu0 0
    %659 = vmatpush2.bf16.msra.mxu0 0
    %660 = vmatprep.subr.bf16.mxu0 0
    %661 = vmatpush2.bf16.msra.mxu0 0
    %662 = vmatprep.subr.bf16.mxu0 0
    %663 = vmatpush2.bf16.msra.mxu0 0
    %664 = vmatprep.subr.bf16.mxu0 0
    %665 = vmatpush2.bf16.msra.mxu0 0
    %666 = vmatprep.subr.bf16.mxu0 0
    %667 = vmatpush2.bf16.msra.mxu0 0
    %668 = vmatprep.subr.bf16.mxu0 0
    %669 = vmatpush2.bf16.msra.mxu0 0
    %670 = vmatprep.mubr.bf16.mxu0 0
    %671 = vmatmul.mubr.bf16.gmra.mxu0 %v629
    %v672 = vpop.f32.mrf.mxu0
    %v673 = vadd.f32 0.0, %v672
    %v674 = vpop.f32.mrf.mxu0
    %v675 = vpop.f32.mrf.mxu0
    %v676 = vadd.f32 0.0, %v675
    %v677 = vpop.f32.mrf.mxu0
    %678 = vdwg.mxu0
    %v679 = vpack.c.bf16 %v676, %v673
    %v680 = vld [vmem:[#allocation11] sm:$0xf]
    %v681 = vld [vmem:[#allocation11 + $0x4] sm:$0xf]
    %v682 = vld [vmem:[#allocation11 + $0x8] sm:$0xf]
    %v683 = vld [vmem:[#allocation11 + $0xc] sm:$0xf]
    %v684 = vld [vmem:[#allocation11 + $0x10] sm:$0xf]
    %v685 = vld [vmem:[#allocation11 + $0x14] sm:$0xf]
    %v686 = vld [vmem:[#allocation11 + $0x18] sm:$0xf]
    %v687 = vld [vmem:[#allocation11 + $0x1c] sm:$0xf]
    %v688 = vld [vmem:[#allocation11 + $0x20] sm:$0xf]
    %v689 = vld [vmem:[#allocation11 + $0x24] sm:$0xf]
    %v690 = vld [vmem:[#allocation11 + $0x28] sm:$0xf]
    %v691 = vld [vmem:[#allocation11 + $0x2c] sm:$0xf]
    %v692 = vld [vmem:[#allocation11 + $0x30] sm:$0xf]
    %v693 = vld [vmem:[#allocation11 + $0x34] sm:$0xf]
    %v694 = vld [vmem:[#allocation11 + $0x38] sm:$0xf]
    %v695 = vld [vmem:[#allocation11 + $0x3c] sm:$0xf]
    %v712 = vunpack.c.l.b16 %v680
    %v713 = vunpack.c.l.b16 %v681
    %v714 = vunpack.c.l.b16 %v682
    %v715 = vunpack.c.l.b16 %v683
    %v716 = vunpack.c.l.b16 %v684
    %v717 = vunpack.c.l.b16 %v685
    %v718 = vunpack.c.l.b16 %v686
    %v719 = vunpack.c.l.b16 %v687
    %v720 = vunpack.c.l.b16 %v688
    %v721 = vunpack.c.l.b16 %v689
    %v722 = vunpack.c.l.b16 %v690
    %v723 = vunpack.c.l.b16 %v691
    %v724 = vunpack.c.l.b16 %v692
    %v725 = vunpack.c.l.b16 %v693
    %v726 = vunpack.c.l.b16 %v694
    %v727 = vunpack.c.l.b16 %v695
    %v728 = vpack.c.b16 %v713, %v712
    %v729 = vpack.c.b16 %v715, %v714
    %v730 = vpack.c.b16 %v717, %v716
    %v731 = vpack.c.b16 %v719, %v718
    %v732 = vpack.c.b16 %v721, %v720
    %v733 = vpack.c.b16 %v723, %v722
    %v734 = vpack.c.b16 %v725, %v724
    %v735 = vpack.c.b16 %v727, %v726
    %744 = vmatprep.subr.bf16.mxu0 0
    %745 = vmatpush1.bf16.msra.mxu0 %v735
    %746 = vmatprep.subr.bf16.mxu0 0
    %747 = vmatpush1.bf16.msra.mxu0 %v734
    %748 = vmatprep.subr.bf16.mxu0 0
    %749 = vmatpush1.bf16.msra.mxu0 %v733
    %750 = vmatprep.subr.bf16.mxu0 0
    %751 = vmatpush1.bf16.msra.mxu0 %v732
    %752 = vmatprep.subr.bf16.mxu0 0
    %753 = vmatpush1.bf16.msra.mxu0 %v731
    %754 = vmatprep.subr.bf16.mxu0 0
    %755 = vmatpush1.bf16.msra.mxu0 %v730
    %756 = vmatprep.subr.bf16.mxu0 0
    %757 = vmatpush1.bf16.msra.mxu0 %v729
    %758 = vmatprep.subr.bf16.mxu0 0
    %759 = vmatpush1.bf16.msra.mxu0 %v728
    %760 = vmatprep.subr.bf16.mxu0 0
    %761 = vmatpush2.bf16.msra.mxu0 0
    %762 = vmatprep.subr.bf16.mxu0 0
    %763 = vmatpush2.bf16.msra.mxu0 0
    %764 = vmatprep.subr.bf16.mxu0 0
    %765 = vmatpush2.bf16.msra.mxu0 0
    %766 = vmatprep.subr.bf16.mxu0 0
    %767 = vmatpush2.bf16.msra.mxu0 0
    %768 = vmatprep.subr.bf16.mxu0 0
    %769 = vmatpush2.bf16.msra.mxu0 0
    %770 = vmatprep.subr.bf16.mxu0 0
    %771 = vmatpush2.bf16.msra.mxu0 0
    %772 = vmatprep.subr.bf16.mxu0 0
    %773 = vmatpush2.bf16.msra.mxu0 0
    %774 = vmatprep.subr.bf16.mxu0 0
    %775 = vmatpush2.bf16.msra.mxu0 0
    %776 = vmatprep.mubr.bf16.mxu0 0
    %777 = vmatmul.mubr.bf16.gmra.mxu0 %v679
    %v778 = vpop.f32.mrf.mxu0
    %v779 = vadd.f32 %v273, %v778
    %v780 = vpop.f32.mrf.mxu0
    %v781 = vpop.f32.mrf.mxu0
    %v782 = vadd.f32 %v274, %v781
    %v783 = vpop.f32.mrf.mxu0
    %784 = vdwg.mxu0
    %v785 = vpack.c.bf16 %v782, %v779
    %s786 = scalar_lea.vmem [#allocation8], 64
    %v787 = vld [vmem:[%s786] sm:$0xf]
    %v788 = vld [vmem:[%s786 + $0x4] sm:$0xf]
    %v789 = vld [vmem:[%s786 + $0x8] sm:$0xf]
    %v790 = vld [vmem:[%s786 + $0xc] sm:$0xf]
    %v791 = vld [vmem:[%s786 + $0x10] sm:$0xf]
    %v792 = vld [vmem:[%s786 + $0x14] sm:$0xf]
    %v793 = vld [vmem:[%s786 + $0x18] sm:$0xf]
    %v794 = vld [vmem:[%s786 + $0x1c] sm:$0xf]
    %v795 = vld [vmem:[%s786 + $0x20] sm:$0xf]
    %v796 = vld [vmem:[%s786 + $0x24] sm:$0xf]
    %v797 = vld [vmem:[%s786 + $0x28] sm:$0xf]
    %v798 = vld [vmem:[%s786 + $0x2c] sm:$0xf]
    %v799 = vld [vmem:[%s786 + $0x30] sm:$0xf]
    %v800 = vld [vmem:[%s786 + $0x34] sm:$0xf]
    %v801 = vld [vmem:[%s786 + $0x38] sm:$0xf]
    %v802 = vld [vmem:[%s786 + $0x3c] sm:$0xf]
    %s803 = scalar_lea.vmem %s4, 1
    %v804 = vld [vmem:[%s803] sm:$0x1]
    %v806 = vlaneseq
    %v807 = vshrl.u32 %v806, 7
    %v808 = vsub.s32 0, %v807
    %v809 = vrot.slane %v804, %v808
    %v827 = vunpack.c.l.b16 %v787
    %v828 = vunpack.c.l.b16 %v788
    %v829 = vunpack.c.l.b16 %v789
    %v830 = vunpack.c.l.b16 %v790
    %v831 = vunpack.c.l.b16 %v791
    %v832 = vunpack.c.l.b16 %v792
    %v833 = vunpack.c.l.b16 %v793
    %v834 = vunpack.c.l.b16 %v794
    %v835 = vunpack.c.l.b16 %v795
    %v836 = vunpack.c.l.b16 %v796
    %v837 = vunpack.c.l.b16 %v797
    %v838 = vunpack.c.l.b16 %v798
    %v839 = vunpack.c.l.b16 %v799
    %v840 = vunpack.c.l.b16 %v800
    %v841 = vunpack.c.l.b16 %v801
    %v842 = vunpack.c.l.b16 %v802
    %v843 = vpack.c.b16 %v828, %v827
    %v844 = vpack.c.b16 %v830, %v829
    %v845 = vpack.c.b16 %v832, %v831
    %v846 = vpack.c.b16 %v834, %v833
    %v847 = vpack.c.b16 %v836, %v835
    %v848 = vpack.c.b16 %v838, %v837
    %v849 = vpack.c.b16 %v840, %v839
    %v850 = vpack.c.b16 %v842, %v841
    %859 = vmatprep.subr.bf16.mxu0 0
    %860 = vmatpush1.bf16.msra.mxu0 %v850
    %861 = vmatprep.subr.bf16.mxu0 0
    %862 = vmatpush1.bf16.msra.mxu0 %v849
    %863 = vmatprep.subr.bf16.mxu0 0
    %864 = vmatpush1.bf16.msra.mxu0 %v848
    %865 = vmatprep.subr.bf16.mxu0 0
    %866 = vmatpush1.bf16.msra.mxu0 %v847
    %867 = vmatprep.subr.bf16.mxu0 0
    %868 = vmatpush1.bf16.msra.mxu0 %v846
    %869 = vmatprep.subr.bf16.mxu0 0
    %870 = vmatpush1.bf16.msra.mxu0 %v845
    %871 = vmatprep.subr.bf16.mxu0 0
    %872 = vmatpush1.bf16.msra.mxu0 %v844
    %873 = vmatprep.subr.bf16.mxu0 0
    %874 = vmatpush1.bf16.msra.mxu0 %v843
    %875 = vmatprep.subr.bf16.mxu0 0
    %876 = vmatpush2.bf16.msra.mxu0 0
    %877 = vmatprep.subr.bf16.mxu0 0
    %878 = vmatpush2.bf16.msra.mxu0 0
    %879 = vmatprep.subr.bf16.mxu0 0
    %880 = vmatpush2.bf16.msra.mxu0 0
    %881 = vmatprep.subr.bf16.mxu0 0
    %882 = vmatpush2.bf16.msra.mxu0 0
    %883 = vmatprep.subr.bf16.mxu0 0
    %884 = vmatpush2.bf16.msra.mxu0 0
    %885 = vmatprep.subr.bf16.mxu0 0
    %886 = vmatpush2.bf16.msra.mxu0 0
    %887 = vmatprep.subr.bf16.mxu0 0
    %888 = vmatpush2.bf16.msra.mxu0 0
    %889 = vmatprep.subr.bf16.mxu0 0
    %890 = vmatpush2.bf16.msra.mxu0 0
    %891 = vmatprep.mubr.bf16.mxu0 0
    %892 = vmatmul.mubr.bf16.gmra.mxu0 %v785
    %v893 = vpop.f32.mrf.mxu0
    %v894 = vadd.f32 %v809, %v893
    %v895 = vpop.f32.mrf.mxu0
    %v896 = vpop.f32.mrf.mxu0
    %v897 = vadd.f32 %v809, %v896
    %v898 = vpop.f32.mrf.mxu0
    %899 = vdwg.mxu0
    %v900 = vmax.f32 %v894, 0.0
    %v901 = vmax.f32 %v897, 0.0
    %s902 = scalar_lea.vmem [#allocation10], 64
    %v903 = vld [vmem:[%s902] sm:$0xf]
    %v904 = vld [vmem:[%s902 + $0x4] sm:$0xf]
    %v905 = vld [vmem:[%s902 + $0x8] sm:$0xf]
    %v906 = vld [vmem:[%s902 + $0xc] sm:$0xf]
    %v907 = vld [vmem:[%s902 + $0x10] sm:$0xf]
    %v908 = vld [vmem:[%s902 + $0x14] sm:$0xf]
    %v909 = vld [vmem:[%s902 + $0x18] sm:$0xf]
    %v910 = vld [vmem:[%s902 + $0x1c] sm:$0xf]
    %v911 = vld [vmem:[%s902 + $0x20] sm:$0xf]
    %v912 = vld [vmem:[%s902 + $0x24] sm:$0xf]
    %v913 = vld [vmem:[%s902 + $0x28] sm:$0xf]
    %v914 = vld [vmem:[%s902 + $0x2c] sm:$0xf]
    %v915 = vld [vmem:[%s902 + $0x30] sm:$0xf]
    %v916 = vld [vmem:[%s902 + $0x34] sm:$0xf]
    %v917 = vld [vmem:[%s902 + $0x38] sm:$0xf]
    %v918 = vld [vmem:[%s902 + $0x3c] sm:$0xf]
    %v935 = vunpack.c.l.b16 %v903
    %v936 = vunpack.c.l.b16 %v904
    %v937 = vunpack.c.l.b16 %v905
    %v938 = vunpack.c.l.b16 %v906
    %v939 = vunpack.c.l.b16 %v907
    %v940 = vunpack.c.l.b16 %v908
    %v941 = vunpack.c.l.b16 %v909
    %v942 = vunpack.c.l.b16 %v910
    %v943 = vunpack.c.l.b16 %v911
    %v944 = vunpack.c.l.b16 %v912
    %v945 = vunpack.c.l.b16 %v913
    %v946 = vunpack.c.l.b16 %v914
    %v947 = vunpack.c.l.b16 %v915
    %v948 = vunpack.c.l.b16 %v916
    %v949 = vunpack.c.l.b16 %v917
    %v950 = vunpack.c.l.b16 %v918
    %v951 = vpack.c.b16 %v936, %v935
    %v952 = vpack.c.b16 %v938, %v937
    %v953 = vpack.c.b16 %v940, %v939
    %v954 = vpack.c.b16 %v942, %v941
    %v955 = vpack.c.b16 %v944, %v943
    %v956 = vpack.c.b16 %v946, %v945
    %v957 = vpack.c.b16 %v948, %v947
    %v958 = vpack.c.b16 %v950, %v949
    %967 = vmatprep.subr.bf16.mxu0 0
    %968 = vmatpush1.bf16.msra.mxu0 %v637
    %969 = vmatprep.subr.bf16.mxu0 0
    %970 = vmatpush1.bf16.msra.mxu0 %v636
    %971 = vmatprep.subr.bf16.mxu0 0
    %972 = vmatpush1.bf16.msra.mxu0 %v635
    %973 = vmatprep.subr.bf16.mxu0 0
    %974 = vmatpush1.bf16.msra.mxu0 %v634
    %975 = vmatprep.subr.bf16.mxu0 0
    %976 = vmatpush1.bf16.msra.mxu0 %v633
    %977 = vmatprep.subr.bf16.mxu0 0
    %978 = vmatpush1.bf16.msra.mxu0 %v632
    %979 = vmatprep.subr.bf16.mxu0 0
    %980 = vmatpush1.bf16.msra.mxu0 %v631
    %981 = vmatprep.subr.bf16.mxu0 0
    %982 = vmatpush1.bf16.msra.mxu0 %v630
    %983 = vmatprep.subr.bf16.mxu0 0
    %984 = vmatpush2.bf16.msra.mxu0 0
    %985 = vmatprep.subr.bf16.mxu0 0
    %986 = vmatpush2.bf16.msra.mxu0 0
    %987 = vmatprep.subr.bf16.mxu0 0
    %988 = vmatpush2.bf16.msra.mxu0 0
    %989 = vmatprep.subr.bf16.mxu0 0
    %990 = vmatpush2.bf16.msra.mxu0 0
    %991 = vmatprep.subr.bf16.mxu0 0
    %992 = vmatpush2.bf16.msra.mxu0 0
    %993 = vmatprep.subr.bf16.mxu0 0
    %994 = vmatpush2.bf16.msra.mxu0 0
    %995 = vmatprep.subr.bf16.mxu0 0
    %996 = vmatpush2.bf16.msra.mxu0 0
    %997 = vmatprep.subr.bf16.mxu0 0
    %998 = vmatpush2.bf16.msra.mxu0 0
    %999 = vmatprep.mubr.bf16.mxu0 0
    %1000 = vmatmul.mubr.bf16.gmra.mxu0 %v951
    %v1001 = vpop.f32.mrf.mxu0
    %v1002 = vadd.f32 0.0, %v1001
    %v1003 = vpop.f32.mrf.mxu0
    %v1004 = vpop.f32.mrf.mxu0
    %v1005 = vadd.f32 0.0, %v1004
    %v1006 = vpop.f32.mrf.mxu0
    %1007 = vmatprep.mubr.bf16.mxu0 0
    %1008 = vmatmul.mubr.bf16.gmra.mxu0 %v952
    %v1009 = vpop.f32.mrf.mxu0
    %v1010 = vadd.f32 0.0, %v1009
    %v1011 = vpop.f32.mrf.mxu0
    %v1012 = vpop.f32.mrf.mxu0
    %v1013 = vadd.f32 0.0, %v1012
    %v1014 = vpop.f32.mrf.mxu0
    %1015 = vmatprep.mubr.bf16.mxu0 0
    %1016 = vmatmul.mubr.bf16.gmra.mxu0 %v953
    %v1017 = vpop.f32.mrf.mxu0
    %v1018 = vadd.f32 0.0, %v1017
    %v1019 = vpop.f32.mrf.mxu0
    %v1020 = vpop.f32.mrf.mxu0
    %v1021 = vadd.f32 0.0, %v1020
    %v1022 = vpop.f32.mrf.mxu0
    %1023 = vmatprep.mubr.bf16.mxu0 0
    %1024 = vmatmul.mubr.bf16.gmra.mxu0 %v954
    %v1025 = vpop.f32.mrf.mxu0
    %v1026 = vadd.f32 0.0, %v1025
    %v1027 = vpop.f32.mrf.mxu0
    %v1028 = vpop.f32.mrf.mxu0
    %v1029 = vadd.f32 0.0, %v1028
    %v1030 = vpop.f32.mrf.mxu0
    %1031 = vmatprep.mubr.bf16.mxu0 0
    %1032 = vmatmul.mubr.bf16.gmra.mxu0 %v955
    %v1033 = vpop.f32.mrf.mxu0
    %v1034 = vadd.f32 0.0, %v1033
    %v1035 = vpop.f32.mrf.mxu0
    %v1036 = vpop.f32.mrf.mxu0
    %v1037 = vadd.f32 0.0, %v1036
    %v1038 = vpop.f32.mrf.mxu0
    %1039 = vmatprep.mubr.bf16.mxu0 0
    %1040 = vmatmul.mubr.bf16.gmra.mxu0 %v956
    %v1041 = vpop.f32.mrf.mxu0
    %v1042 = vadd.f32 0.0, %v1041
    %v1043 = vpop.f32.mrf.mxu0
    %v1044 = vpop.f32.mrf.mxu0
    %v1045 = vadd.f32 0.0, %v1044
    %v1046 = vpop.f32.mrf.mxu0
    %1047 = vmatprep.mubr.bf16.mxu0 0
    %1048 = vmatmul.mubr.bf16.gmra.mxu0 %v957
    %v1049 = vpop.f32.mrf.mxu0
    %v1050 = vadd.f32 0.0, %v1049
    %v1051 = vpop.f32.mrf.mxu0
    %v1052 = vpop.f32.mrf.mxu0
    %v1053 = vadd.f32 0.0, %v1052
    %v1054 = vpop.f32.mrf.mxu0
    %1055 = vmatprep.mubr.bf16.mxu0 0
    %1056 = vmatmul.mubr.bf16.gmra.mxu0 %v958
    %v1057 = vpop.f32.mrf.mxu0
    %v1058 = vadd.f32 0.0, %v1057
    %v1059 = vpop.f32.mrf.mxu0
    %v1060 = vpop.f32.mrf.mxu0
    %v1061 = vadd.f32 0.0, %v1060
    %v1062 = vpop.f32.mrf.mxu0
    %1063 = vdwg.mxu0
    %v1064 = vpack.c.bf16 %v1005, %v1002
    %v1065 = vpack.c.bf16 %v1013, %v1010
    %v1066 = vpack.c.bf16 %v1021, %v1018
    %v1067 = vpack.c.bf16 %v1029, %v1026
    %v1068 = vpack.c.bf16 %v1037, %v1034
    %v1069 = vpack.c.bf16 %v1045, %v1042
    %v1070 = vpack.c.bf16 %v1053, %v1050
    %v1071 = vpack.c.bf16 %v1061, %v1058
    %1072 = vmatprep.subr.bf16.mxu0 0
    %1073 = vmatpush1.bf16.msra.mxu0 %v491
    %1074 = vmatprep.subr.bf16.mxu0 0
    %1075 = vmatpush1.bf16.msra.mxu0 %v490
    %1076 = vmatprep.subr.bf16.mxu0 0
    %1077 = vmatpush1.bf16.msra.mxu0 %v489
    %1078 = vmatprep.subr.bf16.mxu0 0
    %1079 = vmatpush1.bf16.msra.mxu0 %v488
    %1080 = vmatprep.subr.bf16.mxu0 0
    %1081 = vmatpush1.bf16.msra.mxu0 %v487
    %1082 = vmatprep.subr.bf16.mxu0 0
    %1083 = vmatpush1.bf16.msra.mxu0 %v486
    %1084 = vmatprep.subr.bf16.mxu0 0
    %1085 = vmatpush1.bf16.msra.mxu0 %v485
    %1086 = vmatprep.subr.bf16.mxu0 0
    %1087 = vmatpush1.bf16.msra.mxu0 %v484
    %1088 = vmatprep.subr.bf16.mxu0 0
    %1089 = vmatpush2.bf16.msra.mxu0 0
    %1090 = vmatprep.subr.bf16.mxu0 0
    %1091 = vmatpush2.bf16.msra.mxu0 0
    %1092 = vmatprep.subr.bf16.mxu0 0
    %1093 = vmatpush2.bf16.msra.mxu0 0
    %1094 = vmatprep.subr.bf16.mxu0 0
    %1095 = vmatpush2.bf16.msra.mxu0 0
    %1096 = vmatprep.subr.bf16.mxu0 0
    %1097 = vmatpush2.bf16.msra.mxu0 0
    %1098 = vmatprep.subr.bf16.mxu0 0
    %1099 = vmatpush2.bf16.msra.mxu0 0
    %1100 = vmatprep.subr.bf16.mxu0 0
    %1101 = vmatpush2.bf16.msra.mxu0 0
    %1102 = vmatprep.subr.bf16.mxu0 0
    %1103 = vmatpush2.bf16.msra.mxu0 0
    %1104 = vmatprep.mubr.bf16.mxu0 0
    %1105 = vmatmul.mubr.bf16.gmra.mxu0 %v1064
    %v1106 = vpop.f32.mrf.mxu0
    %v1107 = vadd.f32 0.0, %v1106
    %v1108 = vpop.f32.mrf.mxu0
    %v1109 = vpop.f32.mrf.mxu0
    %v1110 = vadd.f32 0.0, %v1109
    %v1111 = vpop.f32.mrf.mxu0
    %1112 = vmatprep.mubr.bf16.mxu0 0
    %1113 = vmatmul.mubr.bf16.gmra.mxu0 %v1065
    %v1114 = vpop.f32.mrf.mxu0
    %v1115 = vadd.f32 0.0, %v1114
    %v1116 = vpop.f32.mrf.mxu0
    %v1117 = vpop.f32.mrf.mxu0
    %v1118 = vadd.f32 0.0, %v1117
    %v1119 = vpop.f32.mrf.mxu0
    %1120 = vmatprep.mubr.bf16.mxu0 0
    %1121 = vmatmul.mubr.bf16.gmra.mxu0 %v1066
    %v1122 = vpop.f32.mrf.mxu0
    %v1123 = vadd.f32 0.0, %v1122
    %v1124 = vpop.f32.mrf.mxu0
    %v1125 = vpop.f32.mrf.mxu0
    %v1126 = vadd.f32 0.0, %v1125
    %v1127 = vpop.f32.mrf.mxu0
    %1128 = vmatprep.mubr.bf16.mxu0 0
    %1129 = vmatmul.mubr.bf16.gmra.mxu0 %v1067
    %v1130 = vpop.f32.mrf.mxu0
    %v1131 = vadd.f32 0.0, %v1130
    %v1132 = vpop.f32.mrf.mxu0
    %v1133 = vpop.f32.mrf.mxu0
    %v1134 = vadd.f32 0.0, %v1133
    %v1135 = vpop.f32.mrf.mxu0
    %1136 = vmatprep.mubr.bf16.mxu0 0
    %1137 = vmatmul.mubr.bf16.gmra.mxu0 %v1068
    %v1138 = vpop.f32.mrf.mxu0
    %v1139 = vadd.f32 0.0, %v1138
    %v1140 = vpop.f32.mrf.mxu0
    %v1141 = vpop.f32.mrf.mxu0
    %v1142 = vadd.f32 0.0, %v1141
    %v1143 = vpop.f32.mrf.mxu0
    %1144 = vmatprep.mubr.bf16.mxu0 0
    %1145 = vmatmul.mubr.bf16.gmra.mxu0 %v1069
    %v1146 = vpop.f32.mrf.mxu0
    %v1147 = vadd.f32 0.0, %v1146
    %v1148 = vpop.f32.mrf.mxu0
    %v1149 = vpop.f32.mrf.mxu0
    %v1150 = vadd.f32 0.0, %v1149
    %v1151 = vpop.f32.mrf.mxu0
    %1152 = vmatprep.mubr.bf16.mxu0 0
    %1153 = vmatmul.mubr.bf16.gmra.mxu0 %v1070
    %v1154 = vpop.f32.mrf.mxu0
    %v1155 = vadd.f32 0.0, %v1154
    %v1156 = vpop.f32.mrf.mxu0
    %v1157 = vpop.f32.mrf.mxu0
    %v1158 = vadd.f32 0.0, %v1157
    %v1159 = vpop.f32.mrf.mxu0
    %1160 = vmatprep.mubr.bf16.mxu0 0
    %1161 = vmatmul.mubr.bf16.gmra.mxu0 %v1071
    %v1162 = vpop.f32.mrf.mxu0
    %v1163 = vadd.f32 0.0, %v1162
    %v1164 = vpop.f32.mrf.mxu0
    %v1165 = vpop.f32.mrf.mxu0
    %v1166 = vadd.f32 0.0, %v1165
    %v1167 = vpop.f32.mrf.mxu0
    %1168 = vdwg.mxu0
    %v1169 = vmul.f32 %v1107, 0.1
    %v1170 = vmul.f32 %v1110, 0.1
    %v1171 = vmul.f32 %v1115, 0.1
    %v1172 = vmul.f32 %v1118, 0.1
    %v1173 = vmul.f32 %v1123, 0.1
    %v1174 = vmul.f32 %v1126, 0.1
    %v1175 = vmul.f32 %v1131, 0.1
    %v1176 = vmul.f32 %v1134, 0.1
    %v1177 = vmul.f32 %v1139, 0.1
    %v1178 = vmul.f32 %v1142, 0.1
    %v1179 = vmul.f32 %v1147, 0.1
    %v1180 = vmul.f32 %v1150, 0.1
    %v1181 = vmul.f32 %v1155, 0.1
    %v1182 = vmul.f32 %v1158, 0.1
    %v1183 = vmul.f32 %v1163, 0.1
    %v1184 = vmul.f32 %v1166, 0.1
    %v1185 = vmax.f32 %v1107, %v1169
    %v1186 = vmax.f32 %v1110, %v1170
    %v1187 = vmax.f32 %v1115, %v1171
    %v1188 = vmax.f32 %v1118, %v1172
    %v1189 = vmax.f32 %v1123, %v1173
    %v1190 = vmax.f32 %v1126, %v1174
    %v1191 = vmax.f32 %v1131, %v1175
    %v1192 = vmax.f32 %v1134, %v1176
    %v1193 = vmax.f32 %v1139, %v1177
    %v1194 = vmax.f32 %v1142, %v1178
    %v1195 = vmax.f32 %v1147, %v1179
    %v1196 = vmax.f32 %v1150, %v1180
    %v1197 = vmax.f32 %v1155, %v1181
    %v1198 = vmax.f32 %v1158, %v1182
    %v1199 = vmax.f32 %v1163, %v1183
    %v1200 = vmax.f32 %v1166, %v1184
    %v1201 = vpack.c.bf16 %v901, %v900
    %v1202 = vpack.c.bf16 %v1186, %v1185
    %v1203 = vpack.c.bf16 %v1188, %v1187
    %v1204 = vpack.c.bf16 %v1190, %v1189
    %v1205 = vpack.c.bf16 %v1192, %v1191
    %v1206 = vpack.c.bf16 %v1194, %v1193
    %v1207 = vpack.c.bf16 %v1196, %v1195
    %v1208 = vpack.c.bf16 %v1198, %v1197
    %v1209 = vpack.c.bf16 %v1200, %v1199
    %1210 = vmatprep.subr.bf16.mxu0 0
    %1211 = vmatpush1.bf16.msra.mxu0 %v1209
    %1212 = vmatprep.subr.bf16.mxu0 0
    %1213 = vmatpush1.bf16.msra.mxu0 %v1208
    %1214 = vmatprep.subr.bf16.mxu0 0
    %1215 = vmatpush1.bf16.msra.mxu0 %v1207
    %1216 = vmatprep.subr.bf16.mxu0 0
    %1217 = vmatpush1.bf16.msra.mxu0 %v1206
    %1218 = vmatprep.subr.bf16.mxu0 0
    %1219 = vmatpush1.bf16.msra.mxu0 %v1205
    %1220 = vmatprep.subr.bf16.mxu0 0
    %1221 = vmatpush1.bf16.msra.mxu0 %v1204
    %1222 = vmatprep.subr.bf16.mxu0 0
    %1223 = vmatpush1.bf16.msra.mxu0 %v1203
    %1224 = vmatprep.subr.bf16.mxu0 0
    %1225 = vmatpush1.bf16.msra.mxu0 %v1202
    %1226 = vmatprep.subr.bf16.mxu0 0
    %1227 = vmatpush2.bf16.msra.mxu0 0
    %1228 = vmatprep.subr.bf16.mxu0 0
    %1229 = vmatpush2.bf16.msra.mxu0 0
    %1230 = vmatprep.subr.bf16.mxu0 0
    %1231 = vmatpush2.bf16.msra.mxu0 0
    %1232 = vmatprep.subr.bf16.mxu0 0
    %1233 = vmatpush2.bf16.msra.mxu0 0
    %1234 = vmatprep.subr.bf16.mxu0 0
    %1235 = vmatpush2.bf16.msra.mxu0 0
    %1236 = vmatprep.subr.bf16.mxu0 0
    %1237 = vmatpush2.bf16.msra.mxu0 0
    %1238 = vmatprep.subr.bf16.mxu0 0
    %1239 = vmatpush2.bf16.msra.mxu0 0
    %1240 = vmatprep.subr.bf16.mxu0 0
    %1241 = vmatpush2.bf16.msra.mxu0 0
    %1242 = vmatprep.mubr.bf16.mxu0 0
    %1243 = vmatmul.mubr.bf16.gmra.mxu0 %v1201
    %v1244 = vpop.f32.mrf.mxu0
    %v1245 = vadd.f32 0.0, %v1244
    %v1246 = vpop.f32.mrf.mxu0
    %v1247 = vpop.f32.mrf.mxu0
    %v1248 = vadd.f32 0.0, %v1247
    %v1249 = vpop.f32.mrf.mxu0
    %1250 = vdwg.mxu0
    %v1251 = vpack.c.bf16 %v1248, %v1245
    %s1252 = scalar_lea.vmem [#allocation11], 64
    %v1253 = vld [vmem:[%s1252] sm:$0xf]
    %v1254 = vld [vmem:[%s1252 + $0x4] sm:$0xf]
    %v1255 = vld [vmem:[%s1252 + $0x8] sm:$0xf]
    %v1256 = vld [vmem:[%s1252 + $0xc] sm:$0xf]
    %v1257 = vld [vmem:[%s1252 + $0x10] sm:$0xf]
    %v1258 = vld [vmem:[%s1252 + $0x14] sm:$0xf]
    %v1259 = vld [vmem:[%s1252 + $0x18] sm:$0xf]
    %v1260 = vld [vmem:[%s1252 + $0x1c] sm:$0xf]
    %v1261 = vld [vmem:[%s1252 + $0x20] sm:$0xf]
    %v1262 = vld [vmem:[%s1252 + $0x24] sm:$0xf]
    %v1263 = vld [vmem:[%s1252 + $0x28] sm:$0xf]
    %v1264 = vld [vmem:[%s1252 + $0x2c] sm:$0xf]
    %v1265 = vld [vmem:[%s1252 + $0x30] sm:$0xf]
    %v1266 = vld [vmem:[%s1252 + $0x34] sm:$0xf]
    %v1267 = vld [vmem:[%s1252 + $0x38] sm:$0xf]
    %v1268 = vld [vmem:[%s1252 + $0x3c] sm:$0xf]
    %v1285 = vunpack.c.l.b16 %v1253
    %v1286 = vunpack.c.l.b16 %v1254
    %v1287 = vunpack.c.l.b16 %v1255
    %v1288 = vunpack.c.l.b16 %v1256
    %v1289 = vunpack.c.l.b16 %v1257
    %v1290 = vunpack.c.l.b16 %v1258
    %v1291 = vunpack.c.l.b16 %v1259
    %v1292 = vunpack.c.l.b16 %v1260
    %v1293 = vunpack.c.l.b16 %v1261
    %v1294 = vunpack.c.l.b16 %v1262
    %v1295 = vunpack.c.l.b16 %v1263
    %v1296 = vunpack.c.l.b16 %v1264
    %v1297 = vunpack.c.l.b16 %v1265
    %v1298 = vunpack.c.l.b16 %v1266
    %v1299 = vunpack.c.l.b16 %v1267
    %v1300 = vunpack.c.l.b16 %v1268
    %v1301 = vpack.c.b16 %v1286, %v1285
    %v1302 = vpack.c.b16 %v1288, %v1287
    %v1303 = vpack.c.b16 %v1290, %v1289
    %v1304 = vpack.c.b16 %v1292, %v1291
    %v1305 = vpack.c.b16 %v1294, %v1293
    %v1306 = vpack.c.b16 %v1296, %v1295
    %v1307 = vpack.c.b16 %v1298, %v1297
    %v1308 = vpack.c.b16 %v1300, %v1299
    %1317 = vmatprep.subr.bf16.mxu0 0
    %1318 = vmatpush1.bf16.msra.mxu0 %v1308
    %1319 = vmatprep.subr.bf16.mxu0 0
    %1320 = vmatpush1.bf16.msra.mxu0 %v1307
    %1321 = vmatprep.subr.bf16.mxu0 0
    %1322 = vmatpush1.bf16.msra.mxu0 %v1306
    %1323 = vmatprep.subr.bf16.mxu0 0
    %1324 = vmatpush1.bf16.msra.mxu0 %v1305
    %1325 = vmatprep.subr.bf16.mxu0 0
    %1326 = vmatpush1.bf16.msra.mxu0 %v1304
    %1327 = vmatprep.subr.bf16.mxu0 0
    %1328 = vmatpush1.bf16.msra.mxu0 %v1303
    %1329 = vmatprep.subr.bf16.mxu0 0
    %1330 = vmatpush1.bf16.msra.mxu0 %v1302
    %1331 = vmatprep.subr.bf16.mxu0 0
    %1332 = vmatpush1.bf16.msra.mxu0 %v1301
    %1333 = vmatprep.subr.bf16.mxu0 0
    %1334 = vmatpush2.bf16.msra.mxu0 0
    %1335 = vmatprep.subr.bf16.mxu0 0
    %1336 = vmatpush2.bf16.msra.mxu0 0
    %1337 = vmatprep.subr.bf16.mxu0 0
    %1338 = vmatpush2.bf16.msra.mxu0 0
    %1339 = vmatprep.subr.bf16.mxu0 0
    %1340 = vmatpush2.bf16.msra.mxu0 0
    %1341 = vmatprep.subr.bf16.mxu0 0
    %1342 = vmatpush2.bf16.msra.mxu0 0
    %1343 = vmatprep.subr.bf16.mxu0 0
    %1344 = vmatpush2.bf16.msra.mxu0 0
    %1345 = vmatprep.subr.bf16.mxu0 0
    %1346 = vmatpush2.bf16.msra.mxu0 0
    %1347 = vmatprep.subr.bf16.mxu0 0
    %1348 = vmatpush2.bf16.msra.mxu0 0
    %1349 = vmatprep.mubr.bf16.mxu0 0
    %1350 = vmatmul.mubr.bf16.gmra.mxu0 %v1251
    %v1351 = vpop.f32.mrf.mxu0
    %v1352 = vadd.f32 %v900, %v1351
    %v1353 = vpop.f32.mrf.mxu0
    %v1354 = vpop.f32.mrf.mxu0
    %v1355 = vadd.f32 %v901, %v1354
    %v1356 = vpop.f32.mrf.mxu0
    %1357 = vdwg.mxu0
    %v1358 = vpack.c.bf16 %v1355, %v1352
    %v1359 = vld [vmem:[#allocation13] sm:$0xff]
    %v1360 = vld [vmem:[#allocation13 + $0x8] sm:$0xff]
    %v1361 = vld [vmem:[#allocation13 + $0x10] sm:$0xff]
    %v1362 = vld [vmem:[#allocation13 + $0x18] sm:$0xff]
    %v1363 = vld [vmem:[#allocation13 + $0x20] sm:$0xff]
    %v1364 = vld [vmem:[#allocation13 + $0x28] sm:$0xff]
    %v1365 = vld [vmem:[#allocation13 + $0x30] sm:$0xff]
    %v1366 = vld [vmem:[#allocation13 + $0x38] sm:$0xff]
    %v1367 = vld [vmem:[#allocation13 + $0x40] sm:$0xff]
    %v1368 = vld [vmem:[#allocation13 + $0x48] sm:$0xff]
    %v1369 = vld [vmem:[#allocation13 + $0x50] sm:$0xff]
    %v1370 = vld [vmem:[#allocation13 + $0x58] sm:$0xff]
    %v1371 = vld [vmem:[#allocation13 + $0x60] sm:$0xff]
    %v1372 = vld [vmem:[#allocation13 + $0x68] sm:$0xff]
    %v1373 = vld [vmem:[#allocation13 + $0x70] sm:$0xff]
    %v1374 = vld [vmem:[#allocation13 + $0x78] sm:$0xff]
    %v1375 = vadd.f32 %v1107, %v1359
    %v1376 = vadd.f32 %v1110, %v1360
    %v1377 = vadd.f32 %v1115, %v1361
    %v1378 = vadd.f32 %v1118, %v1362
    %v1379 = vadd.f32 %v1123, %v1363
    %v1380 = vadd.f32 %v1126, %v1364
    %v1381 = vadd.f32 %v1131, %v1365
    %v1382 = vadd.f32 %v1134, %v1366
    %v1383 = vadd.f32 %v1139, %v1367
    %v1384 = vadd.f32 %v1142, %v1368
    %v1385 = vadd.f32 %v1147, %v1369
    %v1386 = vadd.f32 %v1150, %v1370
    %v1387 = vadd.f32 %v1155, %v1371
    %v1388 = vadd.f32 %v1158, %v1372
    %v1389 = vadd.f32 %v1163, %v1373
    %v1390 = vadd.f32 %v1166, %v1374
    %v1391 = vpack.c.bf16 %v1376, %v1375
    %v1392 = vpack.c.bf16 %v1378, %v1377
    %v1393 = vpack.c.bf16 %v1380, %v1379
    %v1394 = vpack.c.bf16 %v1382, %v1381
    %v1395 = vpack.c.bf16 %v1384, %v1383
    %v1396 = vpack.c.bf16 %v1386, %v1385
    %v1397 = vpack.c.bf16 %v1388, %v1387
    %v1398 = vpack.c.bf16 %v1390, %v1389
    %1399 = vmatprep.subr.bf16.mxu0 0
    %1400 = vmatpush1.bf16.msra.mxu0 %v1398
    %1401 = vmatprep.subr.bf16.mxu0 0
    %1402 = vmatpush1.bf16.msra.mxu0 %v1397
    %1403 = vmatprep.subr.bf16.mxu0 0
    %1404 = vmatpush1.bf16.msra.mxu0 %v1396
    %1405 = vmatprep.subr.bf16.mxu0 0
    %1406 = vmatpush1.bf16.msra.mxu0 %v1395
    %1407 = vmatprep.subr.bf16.mxu0 0
    %1408 = vmatpush1.bf16.msra.mxu0 %v1394
    %1409 = vmatprep.subr.bf16.mxu0 0
    %1410 = vmatpush1.bf16.msra.mxu0 %v1393
    %1411 = vmatprep.subr.bf16.mxu0 0
    %1412 = vmatpush1.bf16.msra.mxu0 %v1392
    %1413 = vmatprep.subr.bf16.mxu0 0
    %1414 = vmatpush1.bf16.msra.mxu0 %v1391
    %1415 = vmatprep.subr.bf16.mxu0 0
    %1416 = vmatpush2.bf16.msra.mxu0 0
    %1417 = vmatprep.subr.bf16.mxu0 0
    %1418 = vmatpush2.bf16.msra.mxu0 0
    %1419 = vmatprep.subr.bf16.mxu0 0
    %1420 = vmatpush2.bf16.msra.mxu0 0
    %1421 = vmatprep.subr.bf16.mxu0 0
    %1422 = vmatpush2.bf16.msra.mxu0 0
    %1423 = vmatprep.subr.bf16.mxu0 0
    %1424 = vmatpush2.bf16.msra.mxu0 0
    %1425 = vmatprep.subr.bf16.mxu0 0
    %1426 = vmatpush2.bf16.msra.mxu0 0
    %1427 = vmatprep.subr.bf16.mxu0 0
    %1428 = vmatpush2.bf16.msra.mxu0 0
    %1429 = vmatprep.subr.bf16.mxu0 0
    %1430 = vmatpush2.bf16.msra.mxu0 0
    %1431 = vmatprep.mubr.bf16.mxu0 0
    %1432 = vmatmul.mubr.bf16.gmra.mxu0 %v1358
    %v1433 = vpop.f32.mrf.mxu0
    %v1434 = vadd.f32 0.0, %v1433
    %v1435 = vpop.f32.mrf.mxu0
    %v1436 = vpop.f32.mrf.mxu0
    %v1437 = vadd.f32 0.0, %v1436
    %v1438 = vpop.f32.mrf.mxu0
    %1439 = vdwg.mxu0
    %1440 = vst [vmem:[#allocation14] sm:$0xff] %v1434
    %1441 = vst [vmem:[#allocation14 + $0x8] sm:$0xff] %v1437
    // Predicated region
    $region62: #{tpu_custom_call.1} parent=1 // pred_check
      _
    $region63: #{tpu_custom_call.1} parent=1 // pred_check_branch
      %1443 = sbr.rel (0) target = $region65
    $region64: #{tpu_custom_call.1} parent=1 // pred_region
      %s1445 = ssub.s32 256, 256
      %1446 = vsyncadd [#allocation4], %s1445
      %s1447 = sshll.u32 [#allocation14], 4
      %s1448 = int_to_ptr.vmem [resolvable:$true] %s1447
      %1453 = dma.vmem_to_hbm [thread:$0]  %s1448, 256, %s8, [#allocation4], 128, 128, 8
    $region65: #{tpu_custom_call.1} parent=1 // pred_fallthru
      _
    // Predicated region
    $region66: #{tpu_custom_call.1} parent=1 // pred_check
      _
    $region67: #{tpu_custom_call.1} parent=1 // pred_check_branch
      %1455 = sbr.rel (0) target = $region69
    $region68: #{tpu_custom_call.1} parent=1 // pred_region
      %1456 = dma.done [#allocation4], 256
    $region69: #{tpu_custom_call.1} parent=1 // pred_fallthru
      _
    %1457 = vsyncpa [#allocation3], 1
    %1458 = vsyncpa [#allocation6], 1
    %1459 = vsyncpa [#allocation9], 1
    %1460 = vsyncpa [#allocation12], 1
    %1461 = vsyncpa [#allocation4], 1

</llo_original>
